<compile_context>
chip_gen: v7x
topology: tpu7x:2x2x1
jax: 0.10.0
libtpu: 0.0.40
codegen_flags: <defaults>
</compile_context>

<pallas_src>
import math

import jax
import jax.numpy as jnp
from jax.experimental import pallas as pl
from jax.experimental.pallas import tpu as pltpu

EPS_UNIT_NORM = 1e-4
EPS_RMS = 1e-6
SWIGLU_SCALE = 0.596  # divisor from the PyTorch forward


# ----------------------------------------------------------------------------
# shared math helpers (work both inside Pallas kernels and in plain JAX)
# ----------------------------------------------------------------------------
def _unit_norm_rows(w):
    """unit_norm along the last (in_features) axis, EDM2 style."""
    fan_in = w.shape[-1]
    n = jnp.sqrt(jnp.sum(jnp.square(w), axis=-1, keepdims=True))
    return w / (EPS_UNIT_NORM + n * (1.0 / math.sqrt(fan_in)))


def _rms_norm(v):
    return v * jax.lax.rsqrt(jnp.mean(jnp.square(v), axis=-1, keepdims=True) + EPS_RMS)


# ----------------------------------------------------------------------------
# Kernel A: MPSelfAttention + first ngpt residual (one batch element per step)
# ----------------------------------------------------------------------------
def _make_attn_kernel(num_heads, head_dim):
    H, dh = num_heads, head_dim

    def kernel(x_ref, w_in_t_ref, w_out_t_ref, gain_ref, ls1_ref, o_ref):
        x = x_ref[0]                                           # (S, D) f32
        S, D = x.shape

        # in_proj: x @ unit_norm(W_in).T  (weights pre-normalized + pre-transposed, bf16)
        qkv = jnp.dot(x.astype(jnp.bfloat16), w_in_t_ref[...],
                      preferred_element_type=jnp.float32)      # (S, 3D) f32

        gain = gain_ref[...]                                    # (1, D) f32
        row = jax.lax.broadcasted_iota(jnp.int32, (S, S), 0)
        col = jax.lax.broadcasted_iota(jnp.int32, (S, S), 1)
        causal = row >= col
        scale = 1.0 / math.sqrt(dh)

        heads = []
        for h in range(H):                                      # static loop, H small
            lo = h * dh
            g = gain[:, lo:lo + dh]                             # (1, dh)
            q = _rms_norm(qkv[:, lo:lo + dh]) * g               # (S, dh)
            k = _rms_norm(qkv[:, D + lo:D + lo + dh]) * g       # (S, dh)
            v = qkv[:, 2 * D + lo:2 * D + lo + dh]              # (S, dh)

            # scores: q @ k.T  (tiny head dims -> keep f32 for accuracy)
            s = jax.lax.dot_general(q, k, (((1,), (1,)), ((), ())),
                                    preferred_element_type=jnp.float32) * scale
            s = jnp.where(causal, s, -1e30)
            s = s - jnp.max(s, axis=-1, keepdims=True)
            p = jnp.exp(s)
            p = p * pl.reciprocal(jnp.sum(p, axis=-1, keepdims=True), approx=False)
            heads.append(jnp.dot(p, v, preferred_element_type=jnp.float32))

        a = _rms_norm(jnp.concatenate(heads, axis=-1))          # (S, D)

        # out_proj
        attn = jnp.dot(a.astype(jnp.bfloat16), w_out_t_ref[...],
                       preferred_element_type=jnp.float32)      # (S, D)

        # ngpt residual #1
        y = _rms_norm(x + ls1_ref[...] * _rms_norm(attn - x))
        o_ref[0] = y.astype(o_ref.dtype)

    return kernel


# ----------------------------------------------------------------------------
# Kernel B: MPSwiGLUNet + second ngpt residual (token-tiled, weights resident)
# ----------------------------------------------------------------------------
def _ff_kernel(x_ref, w1t_ref, w2t_ref, ls2_ref, o_ref):
    x = x_ref[...]                                              # (TN, D) f32

    h = jnp.dot(x.astype(jnp.bfloat16), w1t_ref[...],
                preferred_element_type=jnp.float32)             # (TN, 2*hid)
    hid = w2t_ref.shape[0]
    x1 = h[:, :hid]
    x2 = h[:, hid:]
    gated = (x1 * jax.nn.sigmoid(x1)) * x2                      # f32; 1/0.596 folded into w2_t

    ff = jnp.dot(gated.astype(jnp.bfloat16), w2t_ref[...],
                 preferred_element_type=jnp.float32)            # (TN, D)

    y = _rms_norm(x + ls2_ref[...] * _rms_norm(ff - x))
    o_ref[...] = y.astype(o_ref.dtype)


# ----------------------------------------------------------------------------
# Wrapper
# ----------------------------------------------------------------------------
def mp_encoder_block(x, w_in, w_out, qk_gain, ls1, w1, w2, ls2, *, num_heads, tn=256):
    """MPEncoderBlock forward (res_type='ngpt', rp=None).

    x:       (B, S, D) f32
    w_in:    (3D, D)        in_proj.weight   (PyTorch layout)
    w_out:   (D, D)         out_proj.weight
    qk_gain: (D,)           effective qk_gain (SParameter output)
    ls1,ls2: (D,)           effective layer scales (SParameter outputs)
    w1:      (2*mult*D, D)  lin1.weight
    w2:      (D, mult*D)    lin2.weight
    """
    B, S, D = x.shape
    H = num_heads
    dh = D // H

    # --- hoisted weight prep: normalize once, transpose to (in, out), cast bf16 ---
    w_in_t = _unit_norm_rows(w_in).T.astype(jnp.bfloat16)             # (D, 3D)
    w_out_t = _unit_norm_rows(w_out).T.astype(jnp.bfloat16)           # (D, D)
    w1_t = _unit_norm_rows(w1).T.astype(jnp.bfloat16)                 # (D, 2*mult*D)
    w2_t = (_unit_norm_rows(w2) * (1.0 / SWIGLU_SCALE)).T.astype(jnp.bfloat16)  # (mult*D, D)

    gain2d = qk_gain.reshape(1, D).astype(jnp.float32)
    ls1_2d = ls1.reshape(1, D).astype(jnp.float32)
    ls2_2d = ls2.reshape(1, D).astype(jnp.float32)

    # --- kernel A: attention + residual #1, gridded over batch ---
    y1 = pl.pallas_call(
        _make_attn_kernel(H, dh),
        out_shape=jax.ShapeDtypeStruct((B, S, D), x.dtype),
        grid=(B,),
        in_specs=[
            pl.BlockSpec((1, S, D), lambda b: (b, 0, 0)),
            pl.BlockSpec(w_in_t.shape, lambda b: (0, 0)),
            pl.BlockSpec(w_out_t.shape, lambda b: (0, 0)),
            pl.BlockSpec((1, D), lambda b: (0, 0)),
            pl.BlockSpec((1, D), lambda b: (0, 0)),
        ],
        out_specs=pl.BlockSpec((1, S, D), lambda b: (b, 0, 0)),
        compiler_params=pltpu.CompilerParams(dimension_semantics=("parallel",)),
    )(x, w_in_t, w_out_t, gain2d, ls1_2d)

    # --- kernel B: SwiGLU + residual #2, gridded over flattened tokens ---
    n_tok = B * S
    tn = min(tn, n_tok)
    assert n_tok % tn == 0, "token tile must divide B*S"
    x2d = y1.reshape(n_tok, D)

    y2 = pl.pallas_call(
        _ff_kernel,
        out_shape=jax.ShapeDtypeStruct((n_tok, D), x.dtype),
        grid=(n_tok // tn,),
        in_specs=[
            pl.BlockSpec((tn, D), lambda i: (i, 0)),
            pl.BlockSpec(w1_t.shape, lambda i: (0, 0)),   # weights VMEM-resident
            pl.BlockSpec(w2_t.shape, lambda i: (0, 0)),
            pl.BlockSpec((1, D), lambda i: (0, 0)),
        ],
        out_specs=pl.BlockSpec((tn, D), lambda i: (i, 0)),
        compiler_params=pltpu.CompilerParams(dimension_semantics=("parallel",)),
    )(x2d, w1_t, w2_t, ls2_2d)

    return y2.reshape(B, S, D)


# ----------------------------------------------------------------------------
# Pure-JAX f32 reference mirroring the PyTorch forward
# ----------------------------------------------------------------------------
def mp_encoder_block_ref(x, w_in, w_out, qk_gain, ls1, w1, w2, ls2, num_heads):
    B, S, D = x.shape
    H = num_heads
    dh = D // H

    def mpl(v, w):
        return v @ _unit_norm_rows(w).T

    qkv = mpl(x, w_in).reshape(B, S, 3, H, dh).transpose(2, 0, 3, 1, 4)   # (3,B,H,S,dh)
    q, k, v = qkv[0], qkv[1], qkv[2]
    g = qk_gain.reshape(1, H, 1, dh)
    q = _rms_norm(q) * g
    k = _rms_norm(k) * g
    s = jnp.einsum("bhsd,bhtd->bhst", q, k) / math.sqrt(dh)
    mask = jnp.tril(jnp.ones((S, S), dtype=bool))
    s = jnp.where(mask, s, -jnp.inf)
    p = jax.nn.softmax(s, axis=-1)
    a = jnp.einsum("bhst,bhtd->bhsd", p, v)
    a = a.transpose(0, 2, 1, 3).reshape(B, S, D)
    attn = mpl(_rms_norm(a), w_out)
    x = _rms_norm(x + ls1 * _rms_norm(attn - x))

    h = mpl(x, w1)
    x1, x2 = jnp.split(h, 2, axis=-1)
    ff = mpl(jax.nn.silu(x1) * x2 / SWIGLU_SCALE, w2)
    x = _rms_norm(x + ls2 * _rms_norm(ff - x))
    return x


if __name__ == "__main__":
    # Small shapes consistent with the module: dim=32, heads=4, ff_mult=2, B=2, S=8.
    B, S, D, H, MULT = 2, 8, 32, 4, 2

    key = jax.random.PRNGKey(0)
    ks = jax.random.split(key, 8)

    x = jax.random.normal(ks[0], (B, S, D), dtype=jnp.float32)

    # Parameters mirroring module init (MPLinear weights are unit_norm(randn)),
    # with slight perturbations on the SParameter effective values to exercise
    # the per-channel broadcast paths.
    w_in = _unit_norm_rows(jax.random.normal(ks[1], (3 * D, D), jnp.float32))
    w_out = _unit_norm_rows(jax.random.normal(ks[2], (D, D), jnp.float32))
    w1 = _unit_norm_rows(jax.random.normal(ks[3], (2 * MULT * D, D), jnp.float32))
    w2 = _unit_norm_rows(jax.random.normal(ks[4], (D, MULT * D), jnp.float32))
    qk_gain = 1.0 + 0.05 * jax.random.normal(ks[5], (D,), jnp.float32)
    ls1 = 0.1 * (1.0 + 0.05 * jax.random.normal(ks[6], (D,), jnp.float32))
    ls2 = 0.1 * (1.0 + 0.05 * jax.random.normal(ks[7], (D,), jnp.float32))

    out = mp_encoder_block(x, w_in, w_out, qk_gain, ls1, w1, w2, ls2,
                           num_heads=H, tn=8)
    out = jax.block_until_ready(out)

    ref = mp_encoder_block_ref(x, w_in, w_out, qk_gain, ls1, w1, w2, ls2, H)

    assert out.shape == (B, S, D)
    # Kernel uses bf16 MXU inputs (f32 accumulation); reference is full f32.
    # Tolerance sized for bf16 input rounding through the block (values are O(1)).
    assert jnp.allclose(out, ref, atol=5e-2, rtol=5e-2), "mismatch vs reference"

    print("KERNEL_OK")
</pallas_src>

<mosaic_0001>
module attributes {stable_mosaic.version = 11 : i64} {
  func.func @kernel(%arg0: i32, %arg1: memref<1x8x32xf32, #tpu.memory_space<vmem>>, %arg2: memref<32x96xbf16, #tpu.memory_space<vmem>>, %arg3: memref<32x32xbf16, #tpu.memory_space<vmem>>, %arg4: memref<1x32xf32, #tpu.memory_space<vmem>>, %arg5: memref<1x32xf32, #tpu.memory_space<vmem>>, %arg6: memref<1x8x32xf32, #tpu.memory_space<vmem>>) attributes {dimension_semantics = [#tpu.dimension_semantics<parallel>], iteration_bounds = array<i64: 2>, scalar_prefetch = 0 : i64, scratch_operands = 0 : i64, tpu.core_type = #tpu.core_type<tc>, window_params = [{transform_indices = @transform_0, window_bounds = array<i64: 1, 8, 32>}, {pipeline_mode = #tpu.pipeline_mode<synchronous>, transform_indices = @transform_1, window_bounds = array<i64: 32, 96>}, {pipeline_mode = #tpu.pipeline_mode<synchronous>, transform_indices = @transform_2, window_bounds = array<i64: 32, 32>}, {pipeline_mode = #tpu.pipeline_mode<synchronous>, transform_indices = @transform_3, window_bounds = array<i64: 1, 32>}, {pipeline_mode = #tpu.pipeline_mode<synchronous>, transform_indices = @transform_4, window_bounds = array<i64: 1, 32>}, {transform_indices = @transform_5, window_bounds = array<i64: 1, 8, 32>}]} {
    %c0 = arith.constant 0 : index
    %c0_0 = arith.constant 0 : index
    %c0_1 = arith.constant 0 : index
    %0 = vector.load %arg1[%c0, %c0_0, %c0_1] : memref<1x8x32xf32, #tpu.memory_space<vmem>>, vector<1x8x32xf32>
    %1 = vector.shape_cast %0 : vector<1x8x32xf32> to vector<8x32xf32>
    %2 = arith.truncf %1 : vector<8x32xf32> to vector<8x32xbf16>
    %c0_2 = arith.constant 0 : index
    %c0_3 = arith.constant 0 : index
    %3 = vector.load %arg2[%c0_2, %c0_3] : memref<32x96xbf16, #tpu.memory_space<vmem>>, vector<32x96xbf16>
    %cst = arith.constant dense<0.000000e+00> : vector<8x96xf32>
    %4 = tpu.matmul %2, %3, %cst {dimension_numbers = #tpu.dot_dimension_numbers<[1], [0], [0], [1], [0, 0, 1, 1], [], []>} : vector<8x32xbf16>, vector<32x96xbf16>, vector<8x96xf32> -> vector<8x96xf32>
    %c0_4 = arith.constant 0 : index
    %c0_5 = arith.constant 0 : index
    %5 = vector.load %arg4[%c0_4, %c0_5] : memref<1x32xf32, #tpu.memory_space<vmem>>, vector<1x32xf32>
    %6 = tpu.iota {dimensions = array<i32: 0>} : vector<8x8xi32>
    %7 = tpu.iota {dimensions = array<i32: 1>} : vector<8x8xi32>
    %8 = arith.cmpi sge, %6, %7 : vector<8x8xi32>
    %9 = vector.extract_strided_slice %5 {offsets = [0, 0], sizes = [1, 8], strides = [1, 1]} : vector<1x32xf32> to vector<1x8xf32>
    %10 = vector.extract_strided_slice %4 {offsets = [0, 0], sizes = [8, 8], strides = [1, 1]} : vector<8x96xf32> to vector<8x8xf32>
    %11 = arith.mulf %10, %10 : vector<8x8xf32>
    %cst_6 = arith.constant dense<0.000000e+00> : vector<8xf32>
    %12 = vector.multi_reduction <add>, %11, %cst_6 [1] : vector<8x8xf32> to vector<8xf32>
    %13 = vector.shape_cast %12 : vector<8xf32> to vector<8x1xf32>
    %cst_7 = arith.constant 8.000000e+00 : f32
    %14 = vector.broadcast %cst_7 : f32 to vector<8x1xf32>
    %15 = arith.divf %13, %14 : vector<8x1xf32>
    %cst_8 = arith.constant 9.99999997E-7 : f32
    %16 = vector.broadcast %cst_8 : f32 to vector<8x1xf32>
    %17 = arith.addf %15, %16 : vector<8x1xf32>
    %18 = math.rsqrt %17 : vector<8x1xf32>
    %19 = vector.broadcast %18 : vector<8x1xf32> to vector<8x8xf32>
    %20 = arith.mulf %10, %19 : vector<8x8xf32>
    %21 = vector.broadcast %9 : vector<1x8xf32> to vector<8x8xf32>
    %22 = arith.mulf %20, %21 : vector<8x8xf32>
    %23 = vector.extract_strided_slice %4 {offsets = [0, 32], sizes = [8, 8], strides = [1, 1]} : vector<8x96xf32> to vector<8x8xf32>
    %24 = arith.mulf %23, %23 : vector<8x8xf32>
    %cst_9 = arith.constant dense<0.000000e+00> : vector<8xf32>
    %25 = vector.multi_reduction <add>, %24, %cst_9 [1] : vector<8x8xf32> to vector<8xf32>
    %26 = vector.shape_cast %25 : vector<8xf32> to vector<8x1xf32>
    %cst_10 = arith.constant 8.000000e+00 : f32
    %27 = vector.broadcast %cst_10 : f32 to vector<8x1xf32>
    %28 = arith.divf %26, %27 : vector<8x1xf32>
    %cst_11 = arith.constant 9.99999997E-7 : f32
    %29 = vector.broadcast %cst_11 : f32 to vector<8x1xf32>
    %30 = arith.addf %28, %29 : vector<8x1xf32>
    %31 = math.rsqrt %30 : vector<8x1xf32>
    %32 = vector.broadcast %31 : vector<8x1xf32> to vector<8x8xf32>
    %33 = arith.mulf %23, %32 : vector<8x8xf32>
    %34 = vector.broadcast %9 : vector<1x8xf32> to vector<8x8xf32>
    %35 = arith.mulf %33, %34 : vector<8x8xf32>
    %36 = vector.extract_strided_slice %4 {offsets = [0, 64], sizes = [8, 8], strides = [1, 1]} : vector<8x96xf32> to vector<8x8xf32>
    %cst_12 = arith.constant dense<0.000000e+00> : vector<8x8xf32>
    %37 = tpu.matmul %22, %35, %cst_12 {dimension_numbers = #tpu.dot_dimension_numbers<[1], [1], [0], [0], [0, 0, 1, 0], [], []>} : vector<8x8xf32>, vector<8x8xf32>, vector<8x8xf32> -> vector<8x8xf32>
    %cst_13 = arith.constant 0.353553385 : f32
    %38 = vector.broadcast %cst_13 : f32 to vector<8x8xf32>
    %39 = arith.mulf %37, %38 : vector<8x8xf32>
    %cst_14 = arith.constant -1.000000e+30 : f32
    %40 = vector.broadcast %cst_14 : f32 to vector<8x8xf32>
    %41 = arith.select %8, %39, %40 : vector<8x8xi1>, vector<8x8xf32>
    %cst_15 = arith.constant dense<0xFF800000> : vector<8xf32>
    %42 = vector.multi_reduction <maximumf>, %41, %cst_15 [1] : vector<8x8xf32> to vector<8xf32>
    %43 = vector.shape_cast %42 : vector<8xf32> to vector<8x1xf32>
    %44 = vector.broadcast %43 : vector<8x1xf32> to vector<8x8xf32>
    %45 = arith.subf %41, %44 : vector<8x8xf32>
    %46 = math.exp %45 : vector<8x8xf32>
    %cst_16 = arith.constant dense<0.000000e+00> : vector<8xf32>
    %47 = vector.multi_reduction <add>, %46, %cst_16 [1] : vector<8x8xf32> to vector<8xf32>
    %48 = vector.shape_cast %47 : vector<8xf32> to vector<8x1xf32>
    %49 = tpu.reciprocal %48 : vector<8x1xf32> -> vector<8x1xf32>
    %50 = vector.broadcast %49 : vector<8x1xf32> to vector<8x8xf32>
    %51 = arith.mulf %46, %50 : vector<8x8xf32>
    %cst_17 = arith.constant dense<0.000000e+00> : vector<8x8xf32>
    %52 = tpu.matmul %51, %36, %cst_17 {dimension_numbers = #tpu.dot_dimension_numbers<[1], [0], [0], [1], [0, 0, 1, 1], [], []>} : vector<8x8xf32>, vector<8x8xf32>, vector<8x8xf32> -> vector<8x8xf32>
    %53 = vector.extract_strided_slice %5 {offsets = [0, 8], sizes = [1, 8], strides = [1, 1]} : vector<1x32xf32> to vector<1x8xf32>
    %54 = vector.extract_strided_slice %4 {offsets = [0, 8], sizes = [8, 8], strides = [1, 1]} : vector<8x96xf32> to vector<8x8xf32>
    %55 = arith.mulf %54, %54 : vector<8x8xf32>
    %cst_18 = arith.constant dense<0.000000e+00> : vector<8xf32>
    %56 = vector.multi_reduction <add>, %55, %cst_18 [1] : vector<8x8xf32> to vector<8xf32>
    %57 = vector.shape_cast %56 : vector<8xf32> to vector<8x1xf32>
    %cst_19 = arith.constant 8.000000e+00 : f32
    %58 = vector.broadcast %cst_19 : f32 to vector<8x1xf32>
    %59 = arith.divf %57, %58 : vector<8x1xf32>
    %cst_20 = arith.constant 9.99999997E-7 : f32
    %60 = vector.broadcast %cst_20 : f32 to vector<8x1xf32>
    %61 = arith.addf %59, %60 : vector<8x1xf32>
    %62 = math.rsqrt %61 : vector<8x1xf32>
    %63 = vector.broadcast %62 : vector<8x1xf32> to vector<8x8xf32>
    %64 = arith.mulf %54, %63 : vector<8x8xf32>
    %65 = vector.broadcast %53 : vector<1x8xf32> to vector<8x8xf32>
    %66 = arith.mulf %64, %65 : vector<8x8xf32>
    %67 = vector.extract_strided_slice %4 {offsets = [0, 40], sizes = [8, 8], strides = [1, 1]} : vector<8x96xf32> to vector<8x8xf32>
    %68 = arith.mulf %67, %67 : vector<8x8xf32>
    %cst_21 = arith.constant dense<0.000000e+00> : vector<8xf32>
    %69 = vector.multi_reduction <add>, %68, %cst_21 [1] : vector<8x8xf32> to vector<8xf32>
    %70 = vector.shape_cast %69 : vector<8xf32> to vector<8x1xf32>
    %cst_22 = arith.constant 8.000000e+00 : f32
    %71 = vector.broadcast %cst_22 : f32 to vector<8x1xf32>
    %72 = arith.divf %70, %71 : vector<8x1xf32>
    %cst_23 = arith.constant 9.99999997E-7 : f32
    %73 = vector.broadcast %cst_23 : f32 to vector<8x1xf32>
    %74 = arith.addf %72, %73 : vector<8x1xf32>
    %75 = math.rsqrt %74 : vector<8x1xf32>
    %76 = vector.broadcast %75 : vector<8x1xf32> to vector<8x8xf32>
    %77 = arith.mulf %67, %76 : vector<8x8xf32>
    %78 = vector.broadcast %53 : vector<1x8xf32> to vector<8x8xf32>
    %79 = arith.mulf %77, %78 : vector<8x8xf32>
    %80 = vector.extract_strided_slice %4 {offsets = [0, 72], sizes = [8, 8], strides = [1, 1]} : vector<8x96xf32> to vector<8x8xf32>
    %cst_24 = arith.constant dense<0.000000e+00> : vector<8x8xf32>
    %81 = tpu.matmul %66, %79, %cst_24 {dimension_numbers = #tpu.dot_dimension_numbers<[1], [1], [0], [0], [0, 0, 1, 0], [], []>} : vector<8x8xf32>, vector<8x8xf32>, vector<8x8xf32> -> vector<8x8xf32>
    %cst_25 = arith.constant 0.353553385 : f32
    %82 = vector.broadcast %cst_25 : f32 to vector<8x8xf32>
    %83 = arith.mulf %81, %82 : vector<8x8xf32>
    %cst_26 = arith.constant -1.000000e+30 : f32
    %84 = vector.broadcast %cst_26 : f32 to vector<8x8xf32>
    %85 = arith.select %8, %83, %84 : vector<8x8xi1>, vector<8x8xf32>
    %cst_27 = arith.constant dense<0xFF800000> : vector<8xf32>
    %86 = vector.multi_reduction <maximumf>, %85, %cst_27 [1] : vector<8x8xf32> to vector<8xf32>
    %87 = vector.shape_cast %86 : vector<8xf32> to vector<8x1xf32>
    %88 = vector.broadcast %87 : vector<8x1xf32> to vector<8x8xf32>
    %89 = arith.subf %85, %88 : vector<8x8xf32>
    %90 = math.exp %89 : vector<8x8xf32>
    %cst_28 = arith.constant dense<0.000000e+00> : vector<8xf32>
    %91 = vector.multi_reduction <add>, %90, %cst_28 [1] : vector<8x8xf32> to vector<8xf32>
    %92 = vector.shape_cast %91 : vector<8xf32> to vector<8x1xf32>
    %93 = tpu.reciprocal %92 : vector<8x1xf32> -> vector<8x1xf32>
    %94 = vector.broadcast %93 : vector<8x1xf32> to vector<8x8xf32>
    %95 = arith.mulf %90, %94 : vector<8x8xf32>
    %cst_29 = arith.constant dense<0.000000e+00> : vector<8x8xf32>
    %96 = tpu.matmul %95, %80, %cst_29 {dimension_numbers = #tpu.dot_dimension_numbers<[1], [0], [0], [1], [0, 0, 1, 1], [], []>} : vector<8x8xf32>, vector<8x8xf32>, vector<8x8xf32> -> vector<8x8xf32>
    %97 = vector.extract_strided_slice %5 {offsets = [0, 16], sizes = [1, 8], strides = [1, 1]} : vector<1x32xf32> to vector<1x8xf32>
    %98 = vector.extract_strided_slice %4 {offsets = [0, 16], sizes = [8, 8], strides = [1, 1]} : vector<8x96xf32> to vector<8x8xf32>
    %99 = arith.mulf %98, %98 : vector<8x8xf32>
    %cst_30 = arith.constant dense<0.000000e+00> : vector<8xf32>
    %100 = vector.multi_reduction <add>, %99, %cst_30 [1] : vector<8x8xf32> to vector<8xf32>
    %101 = vector.shape_cast %100 : vector<8xf32> to vector<8x1xf32>
    %cst_31 = arith.constant 8.000000e+00 : f32
    %102 = vector.broadcast %cst_31 : f32 to vector<8x1xf32>
    %103 = arith.divf %101, %102 : vector<8x1xf32>
    %cst_32 = arith.constant 9.99999997E-7 : f32
    %104 = vector.broadcast %cst_32 : f32 to vector<8x1xf32>
    %105 = arith.addf %103, %104 : vector<8x1xf32>
    %106 = math.rsqrt %105 : vector<8x1xf32>
    %107 = vector.broadcast %106 : vector<8x1xf32> to vector<8x8xf32>
    %108 = arith.mulf %98, %107 : vector<8x8xf32>
    %109 = vector.broadcast %97 : vector<1x8xf32> to vector<8x8xf32>
    %110 = arith.mulf %108, %109 : vector<8x8xf32>
    %111 = vector.extract_strided_slice %4 {offsets = [0, 48], sizes = [8, 8], strides = [1, 1]} : vector<8x96xf32> to vector<8x8xf32>
    %112 = arith.mulf %111, %111 : vector<8x8xf32>
    %cst_33 = arith.constant dense<0.000000e+00> : vector<8xf32>
    %113 = vector.multi_reduction <add>, %112, %cst_33 [1] : vector<8x8xf32> to vector<8xf32>
    %114 = vector.shape_cast %113 : vector<8xf32> to vector<8x1xf32>
    %cst_34 = arith.constant 8.000000e+00 : f32
    %115 = vector.broadcast %cst_34 : f32 to vector<8x1xf32>
    %116 = arith.divf %114, %115 : vector<8x1xf32>
    %cst_35 = arith.constant 9.99999997E-7 : f32
    %117 = vector.broadcast %cst_35 : f32 to vector<8x1xf32>
    %118 = arith.addf %116, %117 : vector<8x1xf32>
    %119 = math.rsqrt %118 : vector<8x1xf32>
    %120 = vector.broadcast %119 : vector<8x1xf32> to vector<8x8xf32>
    %121 = arith.mulf %111, %120 : vector<8x8xf32>
    %122 = vector.broadcast %97 : vector<1x8xf32> to vector<8x8xf32>
    %123 = arith.mulf %121, %122 : vector<8x8xf32>
    %124 = vector.extract_strided_slice %4 {offsets = [0, 80], sizes = [8, 8], strides = [1, 1]} : vector<8x96xf32> to vector<8x8xf32>
    %cst_36 = arith.constant dense<0.000000e+00> : vector<8x8xf32>
    %125 = tpu.matmul %110, %123, %cst_36 {dimension_numbers = #tpu.dot_dimension_numbers<[1], [1], [0], [0], [0, 0, 1, 0], [], []>} : vector<8x8xf32>, vector<8x8xf32>, vector<8x8xf32> -> vector<8x8xf32>
    %cst_37 = arith.constant 0.353553385 : f32
    %126 = vector.broadcast %cst_37 : f32 to vector<8x8xf32>
    %127 = arith.mulf %125, %126 : vector<8x8xf32>
    %cst_38 = arith.constant -1.000000e+30 : f32
    %128 = vector.broadcast %cst_38 : f32 to vector<8x8xf32>
    %129 = arith.select %8, %127, %128 : vector<8x8xi1>, vector<8x8xf32>
    %cst_39 = arith.constant dense<0xFF800000> : vector<8xf32>
    %130 = vector.multi_reduction <maximumf>, %129, %cst_39 [1] : vector<8x8xf32> to vector<8xf32>
    %131 = vector.shape_cast %130 : vector<8xf32> to vector<8x1xf32>
    %132 = vector.broadcast %131 : vector<8x1xf32> to vector<8x8xf32>
    %133 = arith.subf %129, %132 : vector<8x8xf32>
    %134 = math.exp %133 : vector<8x8xf32>
    %cst_40 = arith.constant dense<0.000000e+00> : vector<8xf32>
    %135 = vector.multi_reduction <add>, %134, %cst_40 [1] : vector<8x8xf32> to vector<8xf32>
    %136 = vector.shape_cast %135 : vector<8xf32> to vector<8x1xf32>
    %137 = tpu.reciprocal %136 : vector<8x1xf32> -> vector<8x1xf32>
    %138 = vector.broadcast %137 : vector<8x1xf32> to vector<8x8xf32>
    %139 = arith.mulf %134, %138 : vector<8x8xf32>
    %cst_41 = arith.constant dense<0.000000e+00> : vector<8x8xf32>
    %140 = tpu.matmul %139, %124, %cst_41 {dimension_numbers = #tpu.dot_dimension_numbers<[1], [0], [0], [1], [0, 0, 1, 1], [], []>} : vector<8x8xf32>, vector<8x8xf32>, vector<8x8xf32> -> vector<8x8xf32>
    %141 = vector.extract_strided_slice %5 {offsets = [0, 24], sizes = [1, 8], strides = [1, 1]} : vector<1x32xf32> to vector<1x8xf32>
    %142 = vector.extract_strided_slice %4 {offsets = [0, 24], sizes = [8, 8], strides = [1, 1]} : vector<8x96xf32> to vector<8x8xf32>
    %143 = arith.mulf %142, %142 : vector<8x8xf32>
    %cst_42 = arith.constant dense<0.000000e+00> : vector<8xf32>
    %144 = vector.multi_reduction <add>, %143, %cst_42 [1] : vector<8x8xf32> to vector<8xf32>
    %145 = vector.shape_cast %144 : vector<8xf32> to vector<8x1xf32>
    %cst_43 = arith.constant 8.000000e+00 : f32
    %146 = vector.broadcast %cst_43 : f32 to vector<8x1xf32>
    %147 = arith.divf %145, %146 : vector<8x1xf32>
    %cst_44 = arith.constant 9.99999997E-7 : f32
    %148 = vector.broadcast %cst_44 : f32 to vector<8x1xf32>
    %149 = arith.addf %147, %148 : vector<8x1xf32>
    %150 = math.rsqrt %149 : vector<8x1xf32>
    %151 = vector.broadcast %150 : vector<8x1xf32> to vector<8x8xf32>
    %152 = arith.mulf %142, %151 : vector<8x8xf32>
    %153 = vector.broadcast %141 : vector<1x8xf32> to vector<8x8xf32>
    %154 = arith.mulf %152, %153 : vector<8x8xf32>
    %155 = vector.extract_strided_slice %4 {offsets = [0, 56], sizes = [8, 8], strides = [1, 1]} : vector<8x96xf32> to vector<8x8xf32>
    %156 = arith.mulf %155, %155 : vector<8x8xf32>
    %cst_45 = arith.constant dense<0.000000e+00> : vector<8xf32>
    %157 = vector.multi_reduction <add>, %156, %cst_45 [1] : vector<8x8xf32> to vector<8xf32>
    %158 = vector.shape_cast %157 : vector<8xf32> to vector<8x1xf32>
    %cst_46 = arith.constant 8.000000e+00 : f32
    %159 = vector.broadcast %cst_46 : f32 to vector<8x1xf32>
    %160 = arith.divf %158, %159 : vector<8x1xf32>
    %cst_47 = arith.constant 9.99999997E-7 : f32
    %161 = vector.broadcast %cst_47 : f32 to vector<8x1xf32>
    %162 = arith.addf %160, %161 : vector<8x1xf32>
    %163 = math.rsqrt %162 : vector<8x1xf32>
    %164 = vector.broadcast %163 : vector<8x1xf32> to vector<8x8xf32>
    %165 = arith.mulf %155, %164 : vector<8x8xf32>
    %166 = vector.broadcast %141 : vector<1x8xf32> to vector<8x8xf32>
    %167 = arith.mulf %165, %166 : vector<8x8xf32>
    %168 = vector.extract_strided_slice %4 {offsets = [0, 88], sizes = [8, 8], strides = [1, 1]} : vector<8x96xf32> to vector<8x8xf32>
    %cst_48 = arith.constant dense<0.000000e+00> : vector<8x8xf32>
    %169 = tpu.matmul %154, %167, %cst_48 {dimension_numbers = #tpu.dot_dimension_numbers<[1], [1], [0], [0], [0, 0, 1, 0], [], []>} : vector<8x8xf32>, vector<8x8xf32>, vector<8x8xf32> -> vector<8x8xf32>
    %cst_49 = arith.constant 0.353553385 : f32
    %170 = vector.broadcast %cst_49 : f32 to vector<8x8xf32>
    %171 = arith.mulf %169, %170 : vector<8x8xf32>
    %cst_50 = arith.constant -1.000000e+30 : f32
    %172 = vector.broadcast %cst_50 : f32 to vector<8x8xf32>
    %173 = arith.select %8, %171, %172 : vector<8x8xi1>, vector<8x8xf32>
    %cst_51 = arith.constant dense<0xFF800000> : vector<8xf32>
    %174 = vector.multi_reduction <maximumf>, %173, %cst_51 [1] : vector<8x8xf32> to vector<8xf32>
    %175 = vector.shape_cast %174 : vector<8xf32> to vector<8x1xf32>
    %176 = vector.broadcast %175 : vector<8x1xf32> to vector<8x8xf32>
    %177 = arith.subf %173, %176 : vector<8x8xf32>
    %178 = math.exp %177 : vector<8x8xf32>
    %cst_52 = arith.constant dense<0.000000e+00> : vector<8xf32>
    %179 = vector.multi_reduction <add>, %178, %cst_52 [1] : vector<8x8xf32> to vector<8xf32>
    %180 = vector.shape_cast %179 : vector<8xf32> to vector<8x1xf32>
    %181 = tpu.reciprocal %180 : vector<8x1xf32> -> vector<8x1xf32>
    %182 = vector.broadcast %181 : vector<8x1xf32> to vector<8x8xf32>
    %183 = arith.mulf %178, %182 : vector<8x8xf32>
    %cst_53 = arith.constant dense<0.000000e+00> : vector<8x8xf32>
    %184 = tpu.matmul %183, %168, %cst_53 {dimension_numbers = #tpu.dot_dimension_numbers<[1], [0], [0], [1], [0, 0, 1, 1], [], []>} : vector<8x8xf32>, vector<8x8xf32>, vector<8x8xf32> -> vector<8x8xf32>
    %185 = tpu.concatenate %52, %96, %140, %184 in 1 : vector<8x8xf32>, vector<8x8xf32>, vector<8x8xf32>, vector<8x8xf32> -> vector<8x32xf32>
    %186 = arith.mulf %185, %185 : vector<8x32xf32>
    %cst_54 = arith.constant dense<0.000000e+00> : vector<8xf32>
    %187 = vector.multi_reduction <add>, %186, %cst_54 [1] : vector<8x32xf32> to vector<8xf32>
    %188 = vector.shape_cast %187 : vector<8xf32> to vector<8x1xf32>
    %cst_55 = arith.constant 3.200000e+01 : f32
    %189 = vector.broadcast %cst_55 : f32 to vector<8x1xf32>
    %190 = arith.divf %188, %189 : vector<8x1xf32>
    %cst_56 = arith.constant 9.99999997E-7 : f32
    %191 = vector.broadcast %cst_56 : f32 to vector<8x1xf32>
    %192 = arith.addf %190, %191 : vector<8x1xf32>
    %193 = math.rsqrt %192 : vector<8x1xf32>
    %194 = vector.broadcast %193 : vector<8x1xf32> to vector<8x32xf32>
    %195 = arith.mulf %185, %194 : vector<8x32xf32>
    %196 = arith.truncf %195 : vector<8x32xf32> to vector<8x32xbf16>
    %c0_57 = arith.constant 0 : index
    %c0_58 = arith.constant 0 : index
    %197 = vector.load %arg3[%c0_57, %c0_58] : memref<32x32xbf16, #tpu.memory_space<vmem>>, vector<32x32xbf16>
    %cst_59 = arith.constant dense<0.000000e+00> : vector<8x32xf32>
    %198 = tpu.matmul %196, %197, %cst_59 {dimension_numbers = #tpu.dot_dimension_numbers<[1], [0], [0], [1], [0, 0, 1, 1], [], []>} : vector<8x32xbf16>, vector<32x32xbf16>, vector<8x32xf32> -> vector<8x32xf32>
    %c0_60 = arith.constant 0 : index
    %c0_61 = arith.constant 0 : index
    %199 = vector.load %arg5[%c0_60, %c0_61] : memref<1x32xf32, #tpu.memory_space<vmem>>, vector<1x32xf32>
    %200 = arith.subf %198, %1 : vector<8x32xf32>
    %201 = arith.mulf %200, %200 : vector<8x32xf32>
    %cst_62 = arith.constant dense<0.000000e+00> : vector<8xf32>
    %202 = vector.multi_reduction <add>, %201, %cst_62 [1] : vector<8x32xf32> to vector<8xf32>
    %203 = vector.shape_cast %202 : vector<8xf32> to vector<8x1xf32>
    %cst_63 = arith.constant 3.200000e+01 : f32
    %204 = vector.broadcast %cst_63 : f32 to vector<8x1xf32>
    %205 = arith.divf %203, %204 : vector<8x1xf32>
    %cst_64 = arith.constant 9.99999997E-7 : f32
    %206 = vector.broadcast %cst_64 : f32 to vector<8x1xf32>
    %207 = arith.addf %205, %206 : vector<8x1xf32>
    %208 = math.rsqrt %207 : vector<8x1xf32>
    %209 = vector.broadcast %208 : vector<8x1xf32> to vector<8x32xf32>
    %210 = arith.mulf %200, %209 : vector<8x32xf32>
    %211 = vector.broadcast %199 : vector<1x32xf32> to vector<8x32xf32>
    %212 = arith.mulf %211, %210 : vector<8x32xf32>
    %213 = arith.addf %1, %212 : vector<8x32xf32>
    %214 = arith.mulf %213, %213 : vector<8x32xf32>
    %cst_65 = arith.constant dense<0.000000e+00> : vector<8xf32>
    %215 = vector.multi_reduction <add>, %214, %cst_65 [1] : vector<8x32xf32> to vector<8xf32>
    %216 = vector.shape_cast %215 : vector<8xf32> to vector<8x1xf32>
    %cst_66 = arith.constant 3.200000e+01 : f32
    %217 = vector.broadcast %cst_66 : f32 to vector<8x1xf32>
    %218 = arith.divf %216, %217 : vector<8x1xf32>
    %cst_67 = arith.constant 9.99999997E-7 : f32
    %219 = vector.broadcast %cst_67 : f32 to vector<8x1xf32>
    %220 = arith.addf %218, %219 : vector<8x1xf32>
    %221 = math.rsqrt %220 : vector<8x1xf32>
    %222 = vector.broadcast %221 : vector<8x1xf32> to vector<8x32xf32>
    %223 = arith.mulf %213, %222 : vector<8x32xf32>
    %c0_68 = arith.constant 0 : index
    %c0_69 = arith.constant 0 : index
    %c0_70 = arith.constant 0 : index
    %224 = vector.load %arg6[%c0_68, %c0_69, %c0_70] : memref<1x8x32xf32, #tpu.memory_space<vmem>>, vector<1x8x32xf32>
    %225 = vector.shape_cast %224 : vector<1x8x32xf32> to vector<8x32xf32>
    %226 = vector.shape_cast %223 : vector<8x32xf32> to vector<1x8x32xf32>
    tpu.vector_store %arg6[%c0_68, %c0_69, %c0_70], %226 {strides = array<i32>} : memref<1x8x32xf32, #tpu.memory_space<vmem>>, vector<1x8x32xf32>,
    return
  }
  func.func @transform_0(%arg0: i32) -> (i32, i32, i32) {
    %c0_i32 = arith.constant 0 : i32
    %c0_i32_0 = arith.constant 0 : i32
    %c0_i32_1 = arith.constant 0 : i32
    return %arg0, %c0_i32, %c0_i32_0 : i32, i32, i32
  }
  func.func @transform_1(%arg0: i32) -> (i32, i32) {
    %c0_i32 = arith.constant 0 : i32
    %c0_i32_0 = arith.constant 0 : i32
    %c0_i32_1 = arith.constant 0 : i32
    return %c0_i32, %c0_i32_0 : i32, i32
  }
  func.func @transform_2(%arg0: i32) -> (i32, i32) {
    %c0_i32 = arith.constant 0 : i32
    %c0_i32_0 = arith.constant 0 : i32
    %c0_i32_1 = arith.constant 0 : i32
    return %c0_i32, %c0_i32_0 : i32, i32
  }
  func.func @transform_3(%arg0: i32) -> (i32, i32) {
    %c0_i32 = arith.constant 0 : i32
    %c0_i32_0 = arith.constant 0 : i32
    %c0_i32_1 = arith.constant 0 : i32
    return %c0_i32, %c0_i32_0 : i32, i32
  }
  func.func @transform_4(%arg0: i32) -> (i32, i32) {
    %c0_i32 = arith.constant 0 : i32
    %c0_i32_0 = arith.constant 0 : i32
    %c0_i32_1 = arith.constant 0 : i32
    return %c0_i32, %c0_i32_0 : i32, i32
  }
  func.func @transform_5(%arg0: i32) -> (i32, i32, i32) {
    %c0_i32 = arith.constant 0 : i32
    %c0_i32_0 = arith.constant 0 : i32
    %c0_i32_1 = arith.constant 0 : i32
    return %arg0, %c0_i32, %c0_i32_0 : i32, i32, i32
  }
}

</mosaic_0001>

<llo_original>
// kernel: tpu_custom_call.1
$region0: #{tpu_custom_call.1}
  #allocation0 [shape = 'u32[]', space=smem, size = 0x4, offset = 0x4, fixed_abs, tag = 'smem constant byte address 0x4 - core index']
  #allocation1 [shape = 'u32[144,128]{1,0:T(1,128)}', space=vmem, size = 0x12000, scoped, tag = 'internal scratch']
  %s0 = inlined_call_operand.hbm [shape: f32[2,8,32], index: 0, kind: input, shape index: {}]
  %s1 = inlined_call_operand.hbm [shape: bf16[32,96], index: 1, kind: input, shape index: {}]
  %s2 = inlined_call_operand.hbm [shape: bf16[32,32], index: 2, kind: input, shape index: {}]
  %s3 = inlined_call_operand.vmem [shape: f32[1,32], index: 3, kind: input, shape index: {}]
  %s4 = inlined_call_operand.vmem [shape: f32[1,32], index: 4, kind: input, shape index: {}]
  %s5 = inlined_call_operand.hbm [shape: f32[2,8,32], index: 5, kind: output, shape index: {}]
  %s6 = sld [smem:[#allocation0]]
  $region65: #{tpu_custom_call.1} parent=0
    _
  %s8 = ssub.s32 1, %s6
  %s9 = scalar_select 0, %s8, %s6
  $region1: #{tpu_custom_call.1} parent=0
    #allocation2 [shape = 'u8[8192]{0}', space=vmem, size = 0x2000, scoped, tag = 'input window, operand 0']
    #allocation3 [shape = 's32[2]{0}', space=sflag, size = 0x8, scoped, tag = 'scoped memory for tpu_custom_call.1']
    #allocation4 [shape = 's32[2]{0}', space=sflag, size = 0x8, scoped, tag = 'scoped memory for tpu_custom_call.1']
    #allocation5 [shape = 'u8[8192]{0}', space=vmem, size = 0x2000, scoped, tag = 'input window, operand 1, single buffered']
    #allocation6 [shape = 's32[1]{0}', space=sflag, size = 0x4, scoped, tag = 'scoped memory for tpu_custom_call.1']
    #allocation7 [shape = 'u8[8192]{0}', space=vmem, size = 0x2000, scoped, tag = 'input window, operand 2, single buffered']
    #allocation8 [shape = 'u8[8192]{0}', space=vmem, size = 0x2000, scoped, tag = 'output window, operand 0']
    %10 = vsyncpa [#allocation3], 0
    %s11 = scalar_lea.sflag [#allocation3], 1
    %12 = vsyncpa %s11, 0
    %13 = vsyncpa [#allocation6], 0
    %14 = vsyncpa [#allocation4], 0
    %s15 = scalar_lea.sflag [#allocation4], 1
    %16 = vsyncpa %s15, 0
    loop: start=0, step=1, limit=4
    $region2: #{tpu_custom_call.1} parent=1 // loop_pre_header
      _
    $region3: #{tpu_custom_call.1} parent=1 // loop_header
      %s18 = sphi 0, %s22
      %p19 = scmp.ge.s32.totalorder %s18, 4
      %s28 = sphi 0, %s30
      %s31 = sphi 0, %s28
      %s32 = sphi 0, %s31
      %s48 = sphi 0, %s32
      %s52 = sphi 0, %s52
      %s54 = sphi 0, %s52
      %s55 = sphi 0, %s54
      %s69 = sphi 0, %s55
      %s73 = sphi 0, %s73
      %s75 = sphi 0, %s73
      %s76 = sphi 0, %s75
      %s90 = sphi 0, %s76
      %s94 = sphi 0, %s94
      %s96 = sphi 0, %s94
      %s97 = sphi 0, %s96
      %s111 = sphi 0, %s97
      %s115 = sphi 0, %s115
      %s117 = sphi 0, %s115
      %s118 = sphi 0, %s117
      %s132 = sphi 0, %s118
      %s138 = sphi 0, %s140
      %s141 = sphi 0, %s138
      %s142 = sphi 0, %s141
      %s158 = sphi 0, %s142
    $region4: #{tpu_custom_call.1} parent=1 // loop_header_branch
      %21 = sbr.rel (%p19) target = $region8
    $region5: #{tpu_custom_call.1} parent=1 // loop_body
      %s23 = ssub.s32 %s18, 1
      %s24 = ssub.s32 %s18, 2
      %s25 = sadd.s32 %s18, 1
      %s26 = ssub.s32 %s18, %s25
      %p27 = scmp.eq.s32.totalorder %s26, 0
      %s29 = sadd.s32 %s28, 1
      %s30 = scalar_select %p27, %s28, %s29
      %p33 = pneg %p27
      %p34 = scmp.eq.s32.totalorder %s18, 1
      %p35 = por %p33, %p34
      %p36 = scmp.ne.s32.totalorder %s28, %s31
      %p37 = scmp.eq.s32.totalorder %s18, 0
      %p38 = por %p36, %p37
      %p39 = scmp.ne.s32.totalorder %s28, %s31
      %p40 = scmp.eq.s32.totalorder %s23, 1
      %p41 = por %p39, %p40
      %p42 = scmp.ne.s32.totalorder %s31, %s32
      %p43 = scmp.eq.s32.totalorder %s23, 0
      %p44 = por %p42, %p43
      %p45 = scmp.ne.s32.totalorder %s31, %s32
      %p46 = scmp.eq.s32.totalorder %s24, 1
      %p47 = por %p45, %p46
      %p49 = scmp.ne.s32.totalorder %s32, %s48
      %p50 = scmp.eq.s32.totalorder %s24, 0
      %p51 = por %p49, %p50
      %s53 = sadd.s32 %s52, 1
      %p56 = scmp.eq.s32.totalorder %s18, 1
      %p57 = scmp.ne.s32.totalorder %s52, %s54
      %p58 = scmp.eq.s32.totalorder %s18, 0
      %p59 = por %p57, %p58
      %p60 = scmp.ne.s32.totalorder %s52, %s54
      %p61 = scmp.eq.s32.totalorder %s23, 1
      %p62 = por %p60, %p61
      %p63 = scmp.ne.s32.totalorder %s54, %s55
      %p64 = scmp.eq.s32.totalorder %s23, 0
      %p65 = por %p63, %p64
      %p66 = scmp.ne.s32.totalorder %s54, %s55
      %p67 = scmp.eq.s32.totalorder %s24, 1
      %p68 = por %p66, %p67
      %p70 = scmp.ne.s32.totalorder %s55, %s69
      %p71 = scmp.eq.s32.totalorder %s24, 0
      %p72 = por %p70, %p71
      %s74 = sadd.s32 %s73, 1
      %p77 = scmp.eq.s32.totalorder %s18, 1
      %p78 = scmp.ne.s32.totalorder %s73, %s75
      %p79 = scmp.eq.s32.totalorder %s18, 0
      %p80 = por %p78, %p79
      %p81 = scmp.ne.s32.totalorder %s73, %s75
      %p82 = scmp.eq.s32.totalorder %s23, 1
      %p83 = por %p81, %p82
      %p84 = scmp.ne.s32.totalorder %s75, %s76
      %p85 = scmp.eq.s32.totalorder %s23, 0
      %p86 = por %p84, %p85
      %p87 = scmp.ne.s32.totalorder %s75, %s76
      %p88 = scmp.eq.s32.totalorder %s24, 1
      %p89 = por %p87, %p88
      %p91 = scmp.ne.s32.totalorder %s76, %s90
      %p92 = scmp.eq.s32.totalorder %s24, 0
      %p93 = por %p91, %p92
      %s95 = sadd.s32 %s94, 1
      %p98 = scmp.eq.s32.totalorder %s18, 1
      %p99 = scmp.ne.s32.totalorder %s94, %s96
      %p100 = scmp.eq.s32.totalorder %s18, 0
      %p101 = por %p99, %p100
      %p102 = scmp.ne.s32.totalorder %s94, %s96
      %p103 = scmp.eq.s32.totalorder %s23, 1
      %p104 = por %p102, %p103
      %p105 = scmp.ne.s32.totalorder %s96, %s97
      %p106 = scmp.eq.s32.totalorder %s23, 0
      %p107 = por %p105, %p106
      %p108 = scmp.ne.s32.totalorder %s96, %s97
      %p109 = scmp.eq.s32.totalorder %s24, 1
      %p110 = por %p108, %p109
      %p112 = scmp.ne.s32.totalorder %s97, %s111
      %p113 = scmp.eq.s32.totalorder %s24, 0
      %p114 = por %p112, %p113
      %s116 = sadd.s32 %s115, 1
      %p119 = scmp.eq.s32.totalorder %s18, 1
      %p120 = scmp.ne.s32.totalorder %s115, %s117
      %p121 = scmp.eq.s32.totalorder %s18, 0
      %p122 = por %p120, %p121
      %p123 = scmp.ne.s32.totalorder %s115, %s117
      %p124 = scmp.eq.s32.totalorder %s23, 1
      %p125 = por %p123, %p124
      %p126 = scmp.ne.s32.totalorder %s117, %s118
      %p127 = scmp.eq.s32.totalorder %s23, 0
      %p128 = por %p126, %p127
      %p129 = scmp.ne.s32.totalorder %s117, %s118
      %p130 = scmp.eq.s32.totalorder %s24, 1
      %p131 = por %p129, %p130
      %p133 = scmp.ne.s32.totalorder %s118, %s132
      %p134 = scmp.eq.s32.totalorder %s24, 0
      %p135 = por %p133, %p134
      %s136 = ssub.s32 %s18, %s25
      %p137 = scmp.eq.s32.totalorder %s136, 0
      %s139 = sadd.s32 %s138, 1
      %s140 = scalar_select %p137, %s138, %s139
      %p143 = pneg %p137
      %p144 = scmp.eq.s32.totalorder %s18, 1
      %p145 = por %p143, %p144
      %p146 = scmp.ne.s32.totalorder %s138, %s141
      %p147 = scmp.eq.s32.totalorder %s18, 0
      %p148 = por %p146, %p147
      %p149 = scmp.ne.s32.totalorder %s138, %s141
      %p150 = scmp.eq.s32.totalorder %s23, 1
      %p151 = por %p149, %p150
      %p152 = scmp.ne.s32.totalorder %s141, %s142
      %p153 = scmp.eq.s32.totalorder %s23, 0
      %p154 = por %p152, %p153
      %p155 = scmp.ne.s32.totalorder %s141, %s142
      %p156 = scmp.eq.s32.totalorder %s24, 1
      %p157 = por %p155, %p156
      %p159 = scmp.ne.s32.totalorder %s142, %s158
      %p160 = scmp.eq.s32.totalorder %s24, 0
      %p161 = por %p159, %p160
      %p162 = scmp.le.s32.totalorder 1, %s18
      %p163 = scmp.lt.s32.totalorder %s18, 3
      %p164 = pnand %p162, %p163
      %p165 = pneg %p164
      // Predicated region
      $region9: #{tpu_custom_call.1} parent=5 // pred_check
        _
      $region10: #{tpu_custom_call.1} parent=5 // pred_check_branch
        %167 = sbr.rel (%p164) target = $region12
      $region11: #{tpu_custom_call.1} parent=5 // pred_region
        %s168 = ssub.s32 %s18, 1
        // Predicated region
        $region13: #{tpu_custom_call.1} parent=11 // pred_check
          %p169 = pneg %p65
        $region14: #{tpu_custom_call.1} parent=11 // pred_check_branch
          %171 = sbr.rel (%p169) target = $region16
        $region15: #{tpu_custom_call.1} parent=11 // pred_region
          %s173 = ssub.s32 256, 256
          %174 = vsyncadd [#allocation6], %s173
          %s175 = sshll.u32 [#allocation5], 4
          %s176 = int_to_ptr.vmem [resolvable:$true] %s175
          %181 = dma.hbm_to_vmem [thread:$0]  %s1, 256, %s176, [#allocation6], 64, 64, 4
        $region16: #{tpu_custom_call.1} parent=11 // pred_fallthru
          _
        // Predicated region
        $region17: #{tpu_custom_call.1} parent=11 // pred_check
          %p182 = pneg %p86
        $region18: #{tpu_custom_call.1} parent=11 // pred_check_branch
          %184 = sbr.rel (%p182) target = $region20
        $region19: #{tpu_custom_call.1} parent=11 // pred_region
          %s186 = ssub.s32 256, 256
          %187 = vsyncadd [#allocation6], %s186
          %s188 = sshll.u32 [#allocation7], 4
          %s189 = int_to_ptr.vmem [resolvable:$true] %s188
          %194 = dma.hbm_to_vmem [thread:$0]  %s2, 256, %s189, [#allocation6], 64, 64, 4
        $region20: #{tpu_custom_call.1} parent=11 // pred_fallthru
          _
        // Predicated region
        $region21: #{tpu_custom_call.1} parent=11 // pred_check
          %p195 = pneg %p107
        $region22: #{tpu_custom_call.1} parent=11 // pred_check_branch
          %197 = sbr.rel (%p195) target = $region24
        $region23: #{tpu_custom_call.1} parent=11 // pred_region
          _
        $region24: #{tpu_custom_call.1} parent=11 // pred_fallthru
          _
        // Predicated region
        $region25: #{tpu_custom_call.1} parent=11 // pred_check
          %p198 = pneg %p128
        $region26: #{tpu_custom_call.1} parent=11 // pred_check_branch
          %200 = sbr.rel (%p198) target = $region28
        $region27: #{tpu_custom_call.1} parent=11 // pred_region
          _
        $region28: #{tpu_custom_call.1} parent=11 // pred_fallthru
          _
      $region12: #{tpu_custom_call.1} parent=5 // pred_fallthru
        _
      %p201 = scmp.lt.s32.totalorder %s18, 2
      // Predicated region
      $region29: #{tpu_custom_call.1} parent=5 // pred_check
        %p202 = pneg %p201
      $region30: #{tpu_custom_call.1} parent=5 // pred_check_branch
        %204 = sbr.rel (%p202) target = $region32
      $region31: #{tpu_custom_call.1} parent=5 // pred_region
        // Predicated region
        $region33: #{tpu_custom_call.1} parent=31 // pred_check
          %p205 = pneg %p38
        $region34: #{tpu_custom_call.1} parent=31 // pred_check_branch
          %207 = sbr.rel (%p205) target = $region36
        $region35: #{tpu_custom_call.1} parent=31 // pred_region
          %s208 = sand.u32 %s28, 1
          %s209 = scalar_lea.sflag [#allocation3], %s208
          %s210 = sand.u32 %s28, 1
          %s211 = smul.addr %s210, 8
          %s212 = scalar_lea.vmem [#allocation2], %s211
          %s214 = ssub.s32 128, 128
          %215 = vsyncadd %s209, %s214
          %s216 = smul.addr %s18, 128
          %s217 = scalar_lea.hbm %s0, %s216
          %s219 = sshll.u32 %s212, 4
          %s220 = int_to_ptr.vmem [resolvable:$true] %s219
          %222 = dma.hbm_to_vmem [thread:$0]  %s217, 128, %s220, %s209
        $region36: #{tpu_custom_call.1} parent=31 // pred_fallthru
          _
      $region32: #{tpu_custom_call.1} parent=5 // pred_fallthru
        _
      %p223 = scmp.le.s32.totalorder 1, %s18
      %p224 = scmp.lt.s32.totalorder %s18, 3
      %p225 = pnand %p223, %p224
      %p226 = pneg %p225
      // Predicated region
      $region37: #{tpu_custom_call.1} parent=5 // pred_check
        _
      $region38: #{tpu_custom_call.1} parent=5 // pred_check_branch
        %228 = sbr.rel (%p225) target = $region40
      $region39: #{tpu_custom_call.1} parent=5 // pred_region
        %s229 = ssub.s32 %s18, 1
        %s230 = sand.u32 %s31, 1
        %s231 = scalar_lea.sflag [#allocation3], %s230
        %s232 = sand.u32 %s31, 1
        %s233 = smul.addr %s232, 8
        %s234 = scalar_lea.vmem [#allocation2], %s233
        // Predicated region
        $region41: #{tpu_custom_call.1} parent=39 // pred_check
          %p235 = pneg %p44
        $region42: #{tpu_custom_call.1} parent=39 // pred_check_branch
          %237 = sbr.rel (%p235) target = $region44
        $region43: #{tpu_custom_call.1} parent=39 // pred_region
          %238 = dma.done %s231, 128
        $region44: #{tpu_custom_call.1} parent=39 // pred_fallthru
          _
        // Predicated region
        $region45: #{tpu_custom_call.1} parent=39 // pred_check
          %p239 = pneg %p65
        $region46: #{tpu_custom_call.1} parent=39 // pred_check_branch
          %241 = sbr.rel (%p239) target = $region48
        $region47: #{tpu_custom_call.1} parent=39 // pred_region
          %242 = dma.done [#allocation6], 256
        $region48: #{tpu_custom_call.1} parent=39 // pred_fallthru
          _
        // Predicated region
        $region49: #{tpu_custom_call.1} parent=39 // pred_check
          %p243 = pneg %p86
        $region50: #{tpu_custom_call.1} parent=39 // pred_check_branch
          %245 = sbr.rel (%p243) target = $region52
        $region51: #{tpu_custom_call.1} parent=39 // pred_region
          %246 = dma.done [#allocation6], 256
        $region52: #{tpu_custom_call.1} parent=39 // pred_fallthru
          _
        %s247 = sand.u32 %s31, 1
        %s248 = scalar_lea.sflag [#allocation3], %s247
        %s249 = sand.u32 %s31, 1
        %s250 = smul.addr %s249, 8
        %s251 = scalar_lea.vmem [#allocation2], %s250
        %p252 = pneg %p44
        %p253 = pneg %p41
        %p254 = pneg %p65
        %p255 = pneg %p62
        %p256 = pneg %p86
        %p257 = pneg %p83
        %p258 = pneg %p107
        %p259 = pneg %p104
        %p260 = pneg %p128
        %p261 = pneg %p125
        %p262 = pneg %p154
        %p263 = pneg %p151
        %s264 = sand.u32 %s141, 1
        %s265 = scalar_lea.sflag [#allocation4], %s264
        %s266 = sand.u32 %s141, 1
        %s267 = smul.addr %s266, 8
        %s268 = scalar_lea.vmem [#allocation8], %s267
        %v270 = vld [vmem:[%s234] sm:$0xff]
        %v271 = vpack.c.bf16 %v270, %v270
        %v272 = vld [vmem:[#allocation5] sm:$0xf]
        %v273 = vld [vmem:[#allocation5 + $0x4] sm:$0xf]
        %v274 = vld [vmem:[#allocation5 + $0x8] sm:$0xf]
        %v275 = vld [vmem:[#allocation5 + $0xc] sm:$0xf]
        %v280 = vunpack.c.l.b16 %v272
        %v281 = vunpack.c.l.b16 %v273
        %v282 = vunpack.c.l.b16 %v274
        %v283 = vunpack.c.l.b16 %v275
        %v284 = vpack.c.b16 %v281, %v280
        %v285 = vpack.c.b16 %v283, %v282
        %vm288 = vcmask 261120
        %v290 = vsel %vm288, %v271, 0
        %292 = vmatprep.subr.bf16.mxu0 0
        %293 = vmatpush1.bf16.msra.mxu0 %v284
        %294 = vmatprep.subr.bf16.mxu0 0
        %295 = vmatpush1.bf16.msra.mxu0 %v285
        %296 = vmatprep.subr.bf16.mxu0 0
        %297 = vmatpush1.bf16.msra.mxu0 0
        %298 = vmatprep.subr.bf16.mxu0 0
        %299 = vmatpush1.bf16.msra.mxu0 0
        %300 = vmatprep.subr.bf16.mxu0 0
        %301 = vmatpush1.bf16.msra.mxu0 0
        %302 = vmatprep.subr.bf16.mxu0 0
        %303 = vmatpush1.bf16.msra.mxu0 0
        %304 = vmatprep.subr.bf16.mxu0 0
        %305 = vmatpush1.bf16.msra.mxu0 0
        %306 = vmatprep.subr.bf16.mxu0 0
        %307 = vmatpush1.bf16.msra.mxu0 0
        %308 = vmatprep.subr.bf16.mxu0 0
        %309 = vmatpush1.bf16.msra.mxu0 0
        %310 = vmatprep.subr.bf16.mxu0 0
        %311 = vmatpush1.bf16.msra.mxu0 0
        %312 = vmatprep.subr.bf16.mxu0 0
        %313 = vmatpush1.bf16.msra.mxu0 0
        %314 = vmatprep.subr.bf16.mxu0 0
        %315 = vmatpush1.bf16.msra.mxu0 0
        %316 = vmatprep.subr.bf16.mxu0 0
        %317 = vmatpush1.bf16.msra.mxu0 0
        %318 = vmatprep.subr.bf16.mxu0 0
        %319 = vmatpush1.bf16.msra.mxu0 0
        %320 = vmatprep.subr.bf16.mxu0 0
        %321 = vmatpush1.bf16.msra.mxu0 0
        %322 = vmatprep.subr.bf16.mxu0 0
        %323 = vmatpush1.bf16.msra.mxu0 0
        %324 = vmatprep.mubr.bf16.mxu0 0
        %325 = vmatmul.mubr.bf16.gmra.mrb[0].mxu0 %v290
        %v326 = vpop.f32.mrb[0].mxu0
        %v327 = vadd.f32 0.0, %v326
        %v328 = vpop.f32.mrb[0].mxu0
        %v329 = vpop.f32.mrb[0].mxu0
        %v330 = vpop.f32.mrb[0].mxu0
        %331 = vdwg.mxu0
        %v332 = vld [vmem:[%s3] sm:$0x1]
        %v333 = vlaneseq
        %v334 = vshrl.u32 %v333, 7
        %v335 = vlaneseq
        %v336 = vand.u32 %v335, 127
        %vm337 = vcmp.ge.s32.totalorder %v334, %v336
        %v338 = vmul.f32 %v327, %v327
        %vm339 = vcmask 64512
        %v340 = vsel %vm339, %v338, 0.0
        %341 = vadd.xlane.f32.xlu0 %v340
        %v342 = vpop.xlane.xlu0 %341
        %v343 = vrcp.pop 8.0
        %v344 = vmul.f32 %v342, %v343
        %v345 = vadd.f32 %v344, 1e-06
        %v346 = vrsqrt.pop %v345
        %v347 = vmul.f32 %v327, %v346
        %v349 = vlaneseq
        %v350 = vshrl.u32 %v349, 7
        %v351 = vsub.s32 0, %v350
        %v352 = vrot.slane %v332, %v351
        %v354 = vmul.f32 %v347, %v352
        %356 = vrot.lane.b32.xlu0 %v338, 96
        %v357 = vpop.permute.xlu0 %356
        %v359 = vsel %vm339, %v357, 0.0
        %360 = vadd.xlane.f32.xlu0 %v359
        %v361 = vpop.xlane.xlu0 %360
        %v362 = vmul.f32 %v361, %v343
        %v363 = vadd.f32 %v362, 1e-06
        %v364 = vrsqrt.pop %v363
        %v365 = vmul.f32 %v327, %v364
        %366 = vrot.lane.b32.xlu0 %v352, 32
        %v367 = vpop.permute.xlu0 %366
        %v369 = vmul.f32 %v365, %v367
        %371 = vrot.lane.b32.xlu0 %v369, 96
        %v372 = vpop.permute.xlu0 %371
        %v374 = vsel %vm339, %v354, 0
        %v376 = vsel %vm339, %v372, 0
        %378 = vmatprep.subr.mxu0 0.0
        %379 = vmatpush1.xpose.msra.mxu0 %v376
        %380 = vmatprep.subr.mxu0 0.0
        %381 = vmatpush1.xpose.msra.mxu0 0.0
        %382 = vmatprep.subr.mxu0 0.0
        %383 = vmatpush1.xpose.msra.mxu0 0.0
        %384 = vmatprep.subr.mxu0 0.0
        %385 = vmatpush1.xpose.msra.mxu0 0.0
        %386 = vmatprep.subr.mxu0 0.0
        %387 = vmatpush1.xpose.msra.mxu0 0.0
        %388 = vmatprep.subr.mxu0 0.0
        %389 = vmatpush1.xpose.msra.mxu0 0.0
        %390 = vmatprep.subr.mxu0 0.0
        %391 = vmatpush1.xpose.msra.mxu0 0.0
        %392 = vmatprep.subr.mxu0 0.0
        %393 = vmatpush1.xpose.msra.mxu0 0.0
        %394 = vmatprep.subr.mxu0 0.0
        %395 = vmatpush1.xpose.msra.mxu0 0.0
        %396 = vmatprep.subr.mxu0 0.0
        %397 = vmatpush1.xpose.msra.mxu0 0.0
        %398 = vmatprep.subr.mxu0 0.0
        %399 = vmatpush1.xpose.msra.mxu0 0.0
        %400 = vmatprep.subr.mxu0 0.0
        %401 = vmatpush1.xpose.msra.mxu0 0.0
        %402 = vmatprep.subr.mxu0 0.0
        %403 = vmatpush1.xpose.msra.mxu0 0.0
        %404 = vmatprep.subr.mxu0 0.0
        %405 = vmatpush1.xpose.msra.mxu0 0.0
        %406 = vmatprep.subr.mxu0 0.0
        %407 = vmatpush1.xpose.msra.mxu0 0.0
        %408 = vmatprep.subr.mxu0 0.0
        %409 = vmatpush1.xpose.msra.mxu0 0.0
        %410 = vmatprep.subr.mxu0 0.0
        %411 = vmatpush1.xpose.msra.mxu0 0.0
        %412 = vmatprep.subr.mxu0 0.0
        %413 = vmatpush1.xpose.msra.mxu0 0.0
        %414 = vmatprep.subr.mxu0 0.0
        %415 = vmatpush1.xpose.msra.mxu0 0.0
        %416 = vmatprep.subr.mxu0 0.0
        %417 = vmatpush1.xpose.msra.mxu0 0.0
        %418 = vmatprep.subr.mxu0 0.0
        %419 = vmatpush1.xpose.msra.mxu0 0.0
        %420 = vmatprep.subr.mxu0 0.0
        %421 = vmatpush1.xpose.msra.mxu0 0.0
        %422 = vmatprep.subr.mxu0 0.0
        %423 = vmatpush1.xpose.msra.mxu0 0.0
        %424 = vmatprep.subr.mxu0 0.0
        %425 = vmatpush1.xpose.msra.mxu0 0.0
        %426 = vmatprep.subr.mxu0 0.0
        %427 = vmatpush1.xpose.msra.mxu0 0.0
        %428 = vmatprep.subr.mxu0 0.0
        %429 = vmatpush1.xpose.msra.mxu0 0.0
        %430 = vmatprep.subr.mxu0 0.0
        %431 = vmatpush1.xpose.msra.mxu0 0.0
        %432 = vmatprep.subr.mxu0 0.0
        %433 = vmatpush1.xpose.msra.mxu0 0.0
        %434 = vmatprep.subr.mxu0 0.0
        %435 = vmatpush1.xpose.msra.mxu0 0.0
        %436 = vmatprep.subr.mxu0 0.0
        %437 = vmatpush1.xpose.msra.mxu0 0.0
        %438 = vmatprep.subr.mxu0 0.0
        %439 = vmatpush1.xpose.msra.mxu0 0.0
        %440 = vmatprep.subr.mxu0 0.0
        %441 = vmatpush1.xpose.msra.mxu0 0.0
        %442 = vmatprep.mubr.f32.mxu0 0.0
        %443 = vmatmul.mubr.f32.gmra.mrb[0].mxu0 %v374
        %v444 = vpop.f32.mrb[0].mxu0
        %v445 = vadd.f32 0.0, %v444
        %v446 = vpop.f32.mrb[0].mxu0
        %447 = vdwg.mxu0
        %v448 = vmul.f32 %v445, 0.35355338
        %v449 = vsel %vm337, %v448, -1e+30
        %v450 = vsel %vm339, %v449, -inf
        %451 = vmax.xlane.f32.xlu0 %v450
        %v452 = vpop.xlane.xlu0 %451
        %v453 = vsub.f32 %v449, %v452
        %v454 = vmul.f32 %v453, 1.442695
        %v455 = vpow.pop %v454
        %v456 = vsel %vm339, %v455, 0.0
        %457 = vadd.xlane.f32.xlu0 %v456
        %v458 = vpop.xlane.xlu0 %457
        %v459 = vrcp.pop %v458
        %v460 = vmul.f32 %v455, %v459
        %462 = vrot.lane.b32.xlu0 %v327, 64
        %v463 = vpop.permute.xlu0 %462
        %v466 = vsel %vm339, %v460, 0
        %468 = vmatprep.subr.mxu0 0.0
        %469 = vmatpush1.msra.mxu0 %v463
        %470 = vmatprep.subr.mxu0 0.0
        %471 = vmatpush1.msra.mxu0 0.0
        %472 = vmatprep.subr.mxu0 0.0
        %473 = vmatpush1.msra.mxu0 0.0
        %474 = vmatprep.subr.mxu0 0.0
        %475 = vmatpush1.msra.mxu0 0.0
        %476 = vmatprep.subr.mxu0 0.0
        %477 = vmatpush1.msra.mxu0 0.0
        %478 = vmatprep.subr.mxu0 0.0
        %479 = vmatpush1.msra.mxu0 0.0
        %480 = vmatprep.subr.mxu0 0.0
        %481 = vmatpush1.msra.mxu0 0.0
        %482 = vmatprep.subr.mxu0 0.0
        %483 = vmatpush1.msra.mxu0 0.0
        %484 = vmatprep.subr.mxu0 0.0
        %485 = vmatpush1.msra.mxu0 0.0
        %486 = vmatprep.subr.mxu0 0.0
        %487 = vmatpush1.msra.mxu0 0.0
        %488 = vmatprep.subr.mxu0 0.0
        %489 = vmatpush1.msra.mxu0 0.0
        %490 = vmatprep.subr.mxu0 0.0
        %491 = vmatpush1.msra.mxu0 0.0
        %492 = vmatprep.subr.mxu0 0.0
        %493 = vmatpush1.msra.mxu0 0.0
        %494 = vmatprep.subr.mxu0 0.0
        %495 = vmatpush1.msra.mxu0 0.0
        %496 = vmatprep.subr.mxu0 0.0
        %497 = vmatpush1.msra.mxu0 0.0
        %498 = vmatprep.subr.mxu0 0.0
        %499 = vmatpush1.msra.mxu0 0.0
        %500 = vmatprep.subr.mxu0 0.0
        %501 = vmatpush1.msra.mxu0 0.0
        %502 = vmatprep.subr.mxu0 0.0
        %503 = vmatpush1.msra.mxu0 0.0
        %504 = vmatprep.subr.mxu0 0.0
        %505 = vmatpush1.msra.mxu0 0.0
        %506 = vmatprep.subr.mxu0 0.0
        %507 = vmatpush1.msra.mxu0 0.0
        %508 = vmatprep.subr.mxu0 0.0
        %509 = vmatpush1.msra.mxu0 0.0
        %510 = vmatprep.subr.mxu0 0.0
        %511 = vmatpush1.msra.mxu0 0.0
        %512 = vmatprep.subr.mxu0 0.0
        %513 = vmatpush1.msra.mxu0 0.0
        %514 = vmatprep.subr.mxu0 0.0
        %515 = vmatpush1.msra.mxu0 0.0
        %516 = vmatprep.subr.mxu0 0.0
        %517 = vmatpush1.msra.mxu0 0.0
        %518 = vmatprep.subr.mxu0 0.0
        %519 = vmatpush1.msra.mxu0 0.0
        %520 = vmatprep.subr.mxu0 0.0
        %521 = vmatpush1.msra.mxu0 0.0
        %522 = vmatprep.subr.mxu0 0.0
        %523 = vmatpush1.msra.mxu0 0.0
        %524 = vmatprep.subr.mxu0 0.0
        %525 = vmatpush1.msra.mxu0 0.0
        %526 = vmatprep.subr.mxu0 0.0
        %527 = vmatpush1.msra.mxu0 0.0
        %528 = vmatprep.subr.mxu0 0.0
        %529 = vmatpush1.msra.mxu0 0.0
        %530 = vmatprep.subr.mxu0 0.0
        %531 = vmatpush1.msra.mxu0 0.0
        %532 = vmatprep.mubr.f32.mxu0 0.0
        %533 = vmatmul.mubr.f32.gmra.mrb[0].mxu0 %v466
        %v534 = vpop.f32.mrb[0].mxu0
        %v535 = vadd.f32 0.0, %v534
        %v536 = vpop.f32.mrb[0].mxu0
        %537 = vdwg.mxu0
        %538 = vrot.lane.b32.xlu0 %v338, 120
        %v539 = vpop.permute.xlu0 %538
        %v541 = vsel %vm339, %v539, 0.0
        %542 = vadd.xlane.f32.xlu0 %v541
        %v543 = vpop.xlane.xlu0 %542
        %v544 = vmul.f32 %v543, %v343
        %v545 = vadd.f32 %v544, 1e-06
        %v546 = vrsqrt.pop %v545
        %v547 = vmul.f32 %v327, %v546
        %v548 = vmul.f32 %v547, %v352
        %549 = vrot.lane.b32.xlu0 %v338, 88
        %v550 = vpop.permute.xlu0 %549
        %v552 = vsel %vm339, %v550, 0.0
        %553 = vadd.xlane.f32.xlu0 %v552
        %v554 = vpop.xlane.xlu0 %553
        %v555 = vmul.f32 %v554, %v343
        %v556 = vadd.f32 %v555, 1e-06
        %v557 = vrsqrt.pop %v556
        %v558 = vmul.f32 %v327, %v557
        %v559 = vmul.f32 %v558, %v367
        %561 = vrot.lane.b32.xlu0 %v548, 120
        %v562 = vpop.permute.xlu0 %561
        %564 = vrot.lane.b32.xlu0 %v559, 88
        %v565 = vpop.permute.xlu0 %564
        %v566 = vsel %vm339, %v562, 0
        %v568 = vsel %vm339, %v565, 0
        %570 = vmatprep.subr.mxu0 0.0
        %571 = vmatpush1.xpose.msra.mxu0 %v568
        %572 = vmatprep.subr.mxu0 0.0
        %573 = vmatpush1.xpose.msra.mxu0 0.0
        %574 = vmatprep.subr.mxu0 0.0
        %575 = vmatpush1.xpose.msra.mxu0 0.0
        %576 = vmatprep.subr.mxu0 0.0
        %577 = vmatpush1.xpose.msra.mxu0 0.0
        %578 = vmatprep.subr.mxu0 0.0
        %579 = vmatpush1.xpose.msra.mxu0 0.0
        %580 = vmatprep.subr.mxu0 0.0
        %581 = vmatpush1.xpose.msra.mxu0 0.0
        %582 = vmatprep.subr.mxu0 0.0
        %583 = vmatpush1.xpose.msra.mxu0 0.0
        %584 = vmatprep.subr.mxu0 0.0
        %585 = vmatpush1.xpose.msra.mxu0 0.0
        %586 = vmatprep.subr.mxu0 0.0
        %587 = vmatpush1.xpose.msra.mxu0 0.0
        %588 = vmatprep.subr.mxu0 0.0
        %589 = vmatpush1.xpose.msra.mxu0 0.0
        %590 = vmatprep.subr.mxu0 0.0
        %591 = vmatpush1.xpose.msra.mxu0 0.0
        %592 = vmatprep.subr.mxu0 0.0
        %593 = vmatpush1.xpose.msra.mxu0 0.0
        %594 = vmatprep.subr.mxu0 0.0
        %595 = vmatpush1.xpose.msra.mxu0 0.0
        %596 = vmatprep.subr.mxu0 0.0
        %597 = vmatpush1.xpose.msra.mxu0 0.0
        %598 = vmatprep.subr.mxu0 0.0
        %599 = vmatpush1.xpose.msra.mxu0 0.0
        %600 = vmatprep.subr.mxu0 0.0
        %601 = vmatpush1.xpose.msra.mxu0 0.0
        %602 = vmatprep.subr.mxu0 0.0
        %603 = vmatpush1.xpose.msra.mxu0 0.0
        %604 = vmatprep.subr.mxu0 0.0
        %605 = vmatpush1.xpose.msra.mxu0 0.0
        %606 = vmatprep.subr.mxu0 0.0
        %607 = vmatpush1.xpose.msra.mxu0 0.0
        %608 = vmatprep.subr.mxu0 0.0
        %609 = vmatpush1.xpose.msra.mxu0 0.0
        %610 = vmatprep.subr.mxu0 0.0
        %611 = vmatpush1.xpose.msra.mxu0 0.0
        %612 = vmatprep.subr.mxu0 0.0
        %613 = vmatpush1.xpose.msra.mxu0 0.0
        %614 = vmatprep.subr.mxu0 0.0
        %615 = vmatpush1.xpose.msra.mxu0 0.0
        %616 = vmatprep.subr.mxu0 0.0
        %617 = vmatpush1.xpose.msra.mxu0 0.0
        %618 = vmatprep.subr.mxu0 0.0
        %619 = vmatpush1.xpose.msra.mxu0 0.0
        %620 = vmatprep.subr.mxu0 0.0
        %621 = vmatpush1.xpose.msra.mxu0 0.0
        %622 = vmatprep.subr.mxu0 0.0
        %623 = vmatpush1.xpose.msra.mxu0 0.0
        %624 = vmatprep.subr.mxu0 0.0
        %625 = vmatpush1.xpose.msra.mxu0 0.0
        %626 = vmatprep.subr.mxu0 0.0
        %627 = vmatpush1.xpose.msra.mxu0 0.0
        %628 = vmatprep.subr.mxu0 0.0
        %629 = vmatpush1.xpose.msra.mxu0 0.0
        %630 = vmatprep.subr.mxu0 0.0
        %631 = vmatpush1.xpose.msra.mxu0 0.0
        %632 = vmatprep.subr.mxu0 0.0
        %633 = vmatpush1.xpose.msra.mxu0 0.0
        %634 = vmatprep.mubr.f32.mxu0 0.0
        %635 = vmatmul.mubr.f32.gmra.mrb[0].mxu0 %v566
        %v636 = vpop.f32.mrb[0].mxu0
        %v637 = vadd.f32 0.0, %v636
        %v638 = vpop.f32.mrb[0].mxu0
        %639 = vdwg.mxu0
        %v640 = vmul.f32 %v637, 0.35355338
        %v641 = vsel %vm337, %v640, -1e+30
        %v642 = vsel %vm339, %v641, -inf
        %643 = vmax.xlane.f32.xlu0 %v642
        %v644 = vpop.xlane.xlu0 %643
        %v645 = vsub.f32 %v641, %v644
        %v646 = vmul.f32 %v645, 1.442695
        %v647 = vpow.pop %v646
        %v648 = vsel %vm339, %v647, 0.0
        %649 = vadd.xlane.f32.xlu0 %v648
        %v650 = vpop.xlane.xlu0 %649
        %v651 = vrcp.pop %v650
        %v652 = vmul.f32 %v647, %v651
        %653 = vrot.lane.b32.xlu0 %v327, 56
        %v654 = vpop.permute.xlu0 %653
        %v657 = vsel %vm339, %v652, 0
        %659 = vmatprep.subr.mxu0 0.0
        %660 = vmatpush1.msra.mxu0 %v654
        %661 = vmatprep.subr.mxu0 0.0
        %662 = vmatpush1.msra.mxu0 0.0
        %663 = vmatprep.subr.mxu0 0.0
        %664 = vmatpush1.msra.mxu0 0.0
        %665 = vmatprep.subr.mxu0 0.0
        %666 = vmatpush1.msra.mxu0 0.0
        %667 = vmatprep.subr.mxu0 0.0
        %668 = vmatpush1.msra.mxu0 0.0
        %669 = vmatprep.subr.mxu0 0.0
        %670 = vmatpush1.msra.mxu0 0.0
        %671 = vmatprep.subr.mxu0 0.0
        %672 = vmatpush1.msra.mxu0 0.0
        %673 = vmatprep.subr.mxu0 0.0
        %674 = vmatpush1.msra.mxu0 0.0
        %675 = vmatprep.subr.mxu0 0.0
        %676 = vmatpush1.msra.mxu0 0.0
        %677 = vmatprep.subr.mxu0 0.0
        %678 = vmatpush1.msra.mxu0 0.0
        %679 = vmatprep.subr.mxu0 0.0
        %680 = vmatpush1.msra.mxu0 0.0
        %681 = vmatprep.subr.mxu0 0.0
        %682 = vmatpush1.msra.mxu0 0.0
        %683 = vmatprep.subr.mxu0 0.0
        %684 = vmatpush1.msra.mxu0 0.0
        %685 = vmatprep.subr.mxu0 0.0
        %686 = vmatpush1.msra.mxu0 0.0
        %687 = vmatprep.subr.mxu0 0.0
        %688 = vmatpush1.msra.mxu0 0.0
        %689 = vmatprep.subr.mxu0 0.0
        %690 = vmatpush1.msra.mxu0 0.0
        %691 = vmatprep.subr.mxu0 0.0
        %692 = vmatpush1.msra.mxu0 0.0
        %693 = vmatprep.subr.mxu0 0.0
        %694 = vmatpush1.msra.mxu0 0.0
        %695 = vmatprep.subr.mxu0 0.0
        %696 = vmatpush1.msra.mxu0 0.0
        %697 = vmatprep.subr.mxu0 0.0
        %698 = vmatpush1.msra.mxu0 0.0
        %699 = vmatprep.subr.mxu0 0.0
        %700 = vmatpush1.msra.mxu0 0.0
        %701 = vmatprep.subr.mxu0 0.0
        %702 = vmatpush1.msra.mxu0 0.0
        %703 = vmatprep.subr.mxu0 0.0
        %704 = vmatpush1.msra.mxu0 0.0
        %705 = vmatprep.subr.mxu0 0.0
        %706 = vmatpush1.msra.mxu0 0.0
        %707 = vmatprep.subr.mxu0 0.0
        %708 = vmatpush1.msra.mxu0 0.0
        %709 = vmatprep.subr.mxu0 0.0
        %710 = vmatpush1.msra.mxu0 0.0
        %711 = vmatprep.subr.mxu0 0.0
        %712 = vmatpush1.msra.mxu0 0.0
        %713 = vmatprep.subr.mxu0 0.0
        %714 = vmatpush1.msra.mxu0 0.0
        %715 = vmatprep.subr.mxu0 0.0
        %716 = vmatpush1.msra.mxu0 0.0
        %717 = vmatprep.subr.mxu0 0.0
        %718 = vmatpush1.msra.mxu0 0.0
        %719 = vmatprep.subr.mxu0 0.0
        %720 = vmatpush1.msra.mxu0 0.0
        %721 = vmatprep.subr.mxu0 0.0
        %722 = vmatpush1.msra.mxu0 0.0
        %723 = vmatprep.mubr.f32.mxu0 0.0
        %724 = vmatmul.mubr.f32.gmra.mrb[0].mxu0 %v657
        %v725 = vpop.f32.mrb[0].mxu0
        %v726 = vadd.f32 0.0, %v725
        %v727 = vpop.f32.mrb[0].mxu0
        %728 = vdwg.mxu0
        %729 = vrot.lane.b32.xlu0 %v338, 112
        %v730 = vpop.permute.xlu0 %729
        %v732 = vsel %vm339, %v730, 0.0
        %733 = vadd.xlane.f32.xlu0 %v732
        %v734 = vpop.xlane.xlu0 %733
        %v735 = vmul.f32 %v734, %v343
        %v736 = vadd.f32 %v735, 1e-06
        %v737 = vrsqrt.pop %v736
        %v738 = vmul.f32 %v327, %v737
        %v739 = vmul.f32 %v738, %v352
        %740 = vrot.lane.b32.xlu0 %v338, 80
        %v741 = vpop.permute.xlu0 %740
        %v743 = vsel %vm339, %v741, 0.0
        %744 = vadd.xlane.f32.xlu0 %v743
        %v745 = vpop.xlane.xlu0 %744
        %v746 = vmul.f32 %v745, %v343
        %v747 = vadd.f32 %v746, 1e-06
        %v748 = vrsqrt.pop %v747
        %v749 = vmul.f32 %v327, %v748
        %v750 = vmul.f32 %v749, %v367
        %752 = vrot.lane.b32.xlu0 %v739, 112
        %v753 = vpop.permute.xlu0 %752
        %755 = vrot.lane.b32.xlu0 %v750, 80
        %v756 = vpop.permute.xlu0 %755
        %v757 = vsel %vm339, %v753, 0
        %v759 = vsel %vm339, %v756, 0
        %761 = vmatprep.subr.mxu0 0.0
        %762 = vmatpush1.xpose.msra.mxu0 %v759
        %763 = vmatprep.subr.mxu0 0.0
        %764 = vmatpush1.xpose.msra.mxu0 0.0
        %765 = vmatprep.subr.mxu0 0.0
        %766 = vmatpush1.xpose.msra.mxu0 0.0
        %767 = vmatprep.subr.mxu0 0.0
        %768 = vmatpush1.xpose.msra.mxu0 0.0
        %769 = vmatprep.subr.mxu0 0.0
        %770 = vmatpush1.xpose.msra.mxu0 0.0
        %771 = vmatprep.subr.mxu0 0.0
        %772 = vmatpush1.xpose.msra.mxu0 0.0
        %773 = vmatprep.subr.mxu0 0.0
        %774 = vmatpush1.xpose.msra.mxu0 0.0
        %775 = vmatprep.subr.mxu0 0.0
        %776 = vmatpush1.xpose.msra.mxu0 0.0
        %777 = vmatprep.subr.mxu0 0.0
        %778 = vmatpush1.xpose.msra.mxu0 0.0
        %779 = vmatprep.subr.mxu0 0.0
        %780 = vmatpush1.xpose.msra.mxu0 0.0
        %781 = vmatprep.subr.mxu0 0.0
        %782 = vmatpush1.xpose.msra.mxu0 0.0
        %783 = vmatprep.subr.mxu0 0.0
        %784 = vmatpush1.xpose.msra.mxu0 0.0
        %785 = vmatprep.subr.mxu0 0.0
        %786 = vmatpush1.xpose.msra.mxu0 0.0
        %787 = vmatprep.subr.mxu0 0.0
        %788 = vmatpush1.xpose.msra.mxu0 0.0
        %789 = vmatprep.subr.mxu0 0.0
        %790 = vmatpush1.xpose.msra.mxu0 0.0
        %791 = vmatprep.subr.mxu0 0.0
        %792 = vmatpush1.xpose.msra.mxu0 0.0
        %793 = vmatprep.subr.mxu0 0.0
        %794 = vmatpush1.xpose.msra.mxu0 0.0
        %795 = vmatprep.subr.mxu0 0.0
        %796 = vmatpush1.xpose.msra.mxu0 0.0
        %797 = vmatprep.subr.mxu0 0.0
        %798 = vmatpush1.xpose.msra.mxu0 0.0
        %799 = vmatprep.subr.mxu0 0.0
        %800 = vmatpush1.xpose.msra.mxu0 0.0
        %801 = vmatprep.subr.mxu0 0.0
        %802 = vmatpush1.xpose.msra.mxu0 0.0
        %803 = vmatprep.subr.mxu0 0.0
        %804 = vmatpush1.xpose.msra.mxu0 0.0
        %805 = vmatprep.subr.mxu0 0.0
        %806 = vmatpush1.xpose.msra.mxu0 0.0
        %807 = vmatprep.subr.mxu0 0.0
        %808 = vmatpush1.xpose.msra.mxu0 0.0
        %809 = vmatprep.subr.mxu0 0.0
        %810 = vmatpush1.xpose.msra.mxu0 0.0
        %811 = vmatprep.subr.mxu0 0.0
        %812 = vmatpush1.xpose.msra.mxu0 0.0
        %813 = vmatprep.subr.mxu0 0.0
        %814 = vmatpush1.xpose.msra.mxu0 0.0
        %815 = vmatprep.subr.mxu0 0.0
        %816 = vmatpush1.xpose.msra.mxu0 0.0
        %817 = vmatprep.subr.mxu0 0.0
        %818 = vmatpush1.xpose.msra.mxu0 0.0
        %819 = vmatprep.subr.mxu0 0.0
        %820 = vmatpush1.xpose.msra.mxu0 0.0
        %821 = vmatprep.subr.mxu0 0.0
        %822 = vmatpush1.xpose.msra.mxu0 0.0
        %823 = vmatprep.subr.mxu0 0.0
        %824 = vmatpush1.xpose.msra.mxu0 0.0
        %825 = vmatprep.mubr.f32.mxu0 0.0
        %826 = vmatmul.mubr.f32.gmra.mrb[0].mxu0 %v757
        %v827 = vpop.f32.mrb[0].mxu0
        %v828 = vadd.f32 0.0, %v827
        %v829 = vpop.f32.mrb[0].mxu0
        %830 = vdwg.mxu0
        %v831 = vmul.f32 %v828, 0.35355338
        %v832 = vsel %vm337, %v831, -1e+30
        %v833 = vsel %vm339, %v832, -inf
        %834 = vmax.xlane.f32.xlu0 %v833
        %v835 = vpop.xlane.xlu0 %834
        %v836 = vsub.f32 %v832, %v835
        %v837 = vmul.f32 %v836, 1.442695
        %v838 = vpow.pop %v837
        %v839 = vsel %vm339, %v838, 0.0
        %840 = vadd.xlane.f32.xlu0 %v839
        %v841 = vpop.xlane.xlu0 %840
        %v842 = vrcp.pop %v841
        %v843 = vmul.f32 %v838, %v842
        %844 = vrot.lane.b32.xlu0 %v327, 48
        %v845 = vpop.permute.xlu0 %844
        %v848 = vsel %vm339, %v843, 0
        %850 = vmatprep.subr.mxu0 0.0
        %851 = vmatpush1.msra.mxu0 %v845
        %852 = vmatprep.subr.mxu0 0.0
        %853 = vmatpush1.msra.mxu0 0.0
        %854 = vmatprep.subr.mxu0 0.0
        %855 = vmatpush1.msra.mxu0 0.0
        %856 = vmatprep.subr.mxu0 0.0
        %857 = vmatpush1.msra.mxu0 0.0
        %858 = vmatprep.subr.mxu0 0.0
        %859 = vmatpush1.msra.mxu0 0.0
        %860 = vmatprep.subr.mxu0 0.0
        %861 = vmatpush1.msra.mxu0 0.0
        %862 = vmatprep.subr.mxu0 0.0
        %863 = vmatpush1.msra.mxu0 0.0
        %864 = vmatprep.subr.mxu0 0.0
        %865 = vmatpush1.msra.mxu0 0.0
        %866 = vmatprep.subr.mxu0 0.0
        %867 = vmatpush1.msra.mxu0 0.0
        %868 = vmatprep.subr.mxu0 0.0
        %869 = vmatpush1.msra.mxu0 0.0
        %870 = vmatprep.subr.mxu0 0.0
        %871 = vmatpush1.msra.mxu0 0.0
        %872 = vmatprep.subr.mxu0 0.0
        %873 = vmatpush1.msra.mxu0 0.0
        %874 = vmatprep.subr.mxu0 0.0
        %875 = vmatpush1.msra.mxu0 0.0
        %876 = vmatprep.subr.mxu0 0.0
        %877 = vmatpush1.msra.mxu0 0.0
        %878 = vmatprep.subr.mxu0 0.0
        %879 = vmatpush1.msra.mxu0 0.0
        %880 = vmatprep.subr.mxu0 0.0
        %881 = vmatpush1.msra.mxu0 0.0
        %882 = vmatprep.subr.mxu0 0.0
        %883 = vmatpush1.msra.mxu0 0.0
        %884 = vmatprep.subr.mxu0 0.0
        %885 = vmatpush1.msra.mxu0 0.0
        %886 = vmatprep.subr.mxu0 0.0
        %887 = vmatpush1.msra.mxu0 0.0
        %888 = vmatprep.subr.mxu0 0.0
        %889 = vmatpush1.msra.mxu0 0.0
        %890 = vmatprep.subr.mxu0 0.0
        %891 = vmatpush1.msra.mxu0 0.0
        %892 = vmatprep.subr.mxu0 0.0
        %893 = vmatpush1.msra.mxu0 0.0
        %894 = vmatprep.subr.mxu0 0.0
        %895 = vmatpush1.msra.mxu0 0.0
        %896 = vmatprep.subr.mxu0 0.0
        %897 = vmatpush1.msra.mxu0 0.0
        %898 = vmatprep.subr.mxu0 0.0
        %899 = vmatpush1.msra.mxu0 0.0
        %900 = vmatprep.subr.mxu0 0.0
        %901 = vmatpush1.msra.mxu0 0.0
        %902 = vmatprep.subr.mxu0 0.0
        %903 = vmatpush1.msra.mxu0 0.0
        %904 = vmatprep.subr.mxu0 0.0
        %905 = vmatpush1.msra.mxu0 0.0
        %906 = vmatprep.subr.mxu0 0.0
        %907 = vmatpush1.msra.mxu0 0.0
        %908 = vmatprep.subr.mxu0 0.0
        %909 = vmatpush1.msra.mxu0 0.0
        %910 = vmatprep.subr.mxu0 0.0
        %911 = vmatpush1.msra.mxu0 0.0
        %912 = vmatprep.subr.mxu0 0.0
        %913 = vmatpush1.msra.mxu0 0.0
        %914 = vmatprep.mubr.f32.mxu0 0.0
        %915 = vmatmul.mubr.f32.gmra.mrb[0].mxu0 %v848
        %v916 = vpop.f32.mrb[0].mxu0
        %v917 = vadd.f32 0.0, %v916
        %v918 = vpop.f32.mrb[0].mxu0
        %919 = vdwg.mxu0
        %920 = vrot.lane.b32.xlu0 %v338, 104
        %v921 = vpop.permute.xlu0 %920
        %v923 = vsel %vm339, %v921, 0.0
        %924 = vadd.xlane.f32.xlu0 %v923
        %v925 = vpop.xlane.xlu0 %924
        %v926 = vmul.f32 %v925, %v343
        %v927 = vadd.f32 %v926, 1e-06
        %v928 = vrsqrt.pop %v927
        %v929 = vmul.f32 %v327, %v928
        %v930 = vmul.f32 %v929, %v352
        %931 = vrot.lane.b32.xlu0 %v338, 72
        %v932 = vpop.permute.xlu0 %931
        %v934 = vsel %vm339, %v932, 0.0
        %935 = vadd.xlane.f32.xlu0 %v934
        %v936 = vpop.xlane.xlu0 %935
        %v937 = vmul.f32 %v936, %v343
        %v938 = vadd.f32 %v937, 1e-06
        %v939 = vrsqrt.pop %v938
        %v940 = vmul.f32 %v327, %v939
        %v941 = vmul.f32 %v940, %v367
        %943 = vrot.lane.b32.xlu0 %v930, 104
        %v944 = vpop.permute.xlu0 %943
        %946 = vrot.lane.b32.xlu0 %v941, 72
        %v947 = vpop.permute.xlu0 %946
        %v948 = vsel %vm339, %v944, 0
        %v950 = vsel %vm339, %v947, 0
        %952 = vmatprep.subr.mxu0 0.0
        %953 = vmatpush1.xpose.msra.mxu0 %v950
        %954 = vmatprep.subr.mxu0 0.0
        %955 = vmatpush1.xpose.msra.mxu0 0.0
        %956 = vmatprep.subr.mxu0 0.0
        %957 = vmatpush1.xpose.msra.mxu0 0.0
        %958 = vmatprep.subr.mxu0 0.0
        %959 = vmatpush1.xpose.msra.mxu0 0.0
        %960 = vmatprep.subr.mxu0 0.0
        %961 = vmatpush1.xpose.msra.mxu0 0.0
        %962 = vmatprep.subr.mxu0 0.0
        %963 = vmatpush1.xpose.msra.mxu0 0.0
        %964 = vmatprep.subr.mxu0 0.0
        %965 = vmatpush1.xpose.msra.mxu0 0.0
        %966 = vmatprep.subr.mxu0 0.0
        %967 = vmatpush1.xpose.msra.mxu0 0.0
        %968 = vmatprep.subr.mxu0 0.0
        %969 = vmatpush1.xpose.msra.mxu0 0.0
        %970 = vmatprep.subr.mxu0 0.0
        %971 = vmatpush1.xpose.msra.mxu0 0.0
        %972 = vmatprep.subr.mxu0 0.0
        %973 = vmatpush1.xpose.msra.mxu0 0.0
        %974 = vmatprep.subr.mxu0 0.0
        %975 = vmatpush1.xpose.msra.mxu0 0.0
        %976 = vmatprep.subr.mxu0 0.0
        %977 = vmatpush1.xpose.msra.mxu0 0.0
        %978 = vmatprep.subr.mxu0 0.0
        %979 = vmatpush1.xpose.msra.mxu0 0.0
        %980 = vmatprep.subr.mxu0 0.0
        %981 = vmatpush1.xpose.msra.mxu0 0.0
        %982 = vmatprep.subr.mxu0 0.0
        %983 = vmatpush1.xpose.msra.mxu0 0.0
        %984 = vmatprep.subr.mxu0 0.0
        %985 = vmatpush1.xpose.msra.mxu0 0.0
        %986 = vmatprep.subr.mxu0 0.0
        %987 = vmatpush1.xpose.msra.mxu0 0.0
        %988 = vmatprep.subr.mxu0 0.0
        %989 = vmatpush1.xpose.msra.mxu0 0.0
        %990 = vmatprep.subr.mxu0 0.0
        %991 = vmatpush1.xpose.msra.mxu0 0.0
        %992 = vmatprep.subr.mxu0 0.0
        %993 = vmatpush1.xpose.msra.mxu0 0.0
        %994 = vmatprep.subr.mxu0 0.0
        %995 = vmatpush1.xpose.msra.mxu0 0.0
        %996 = vmatprep.subr.mxu0 0.0
        %997 = vmatpush1.xpose.msra.mxu0 0.0
        %998 = vmatprep.subr.mxu0 0.0
        %999 = vmatpush1.xpose.msra.mxu0 0.0
        %1000 = vmatprep.subr.mxu0 0.0
        %1001 = vmatpush1.xpose.msra.mxu0 0.0
        %1002 = vmatprep.subr.mxu0 0.0
        %1003 = vmatpush1.xpose.msra.mxu0 0.0
        %1004 = vmatprep.subr.mxu0 0.0
        %1005 = vmatpush1.xpose.msra.mxu0 0.0
        %1006 = vmatprep.subr.mxu0 0.0
        %1007 = vmatpush1.xpose.msra.mxu0 0.0
        %1008 = vmatprep.subr.mxu0 0.0
        %1009 = vmatpush1.xpose.msra.mxu0 0.0
        %1010 = vmatprep.subr.mxu0 0.0
        %1011 = vmatpush1.xpose.msra.mxu0 0.0
        %1012 = vmatprep.subr.mxu0 0.0
        %1013 = vmatpush1.xpose.msra.mxu0 0.0
        %1014 = vmatprep.subr.mxu0 0.0
        %1015 = vmatpush1.xpose.msra.mxu0 0.0
        %1016 = vmatprep.mubr.f32.mxu0 0.0
        %1017 = vmatmul.mubr.f32.gmra.mrb[0].mxu0 %v948
        %v1018 = vpop.f32.mrb[0].mxu0
        %v1019 = vadd.f32 0.0, %v1018
        %v1020 = vpop.f32.mrb[0].mxu0
        %1021 = vdwg.mxu0
        %v1022 = vmul.f32 %v1019, 0.35355338
        %v1023 = vsel %vm337, %v1022, -1e+30
        %v1024 = vsel %vm339, %v1023, -inf
        %1025 = vmax.xlane.f32.xlu0 %v1024
        %v1026 = vpop.xlane.xlu0 %1025
        %v1027 = vsub.f32 %v1023, %v1026
        %v1028 = vmul.f32 %v1027, 1.442695
        %v1029 = vpow.pop %v1028
        %v1030 = vsel %vm339, %v1029, 0.0
        %1031 = vadd.xlane.f32.xlu0 %v1030
        %v1032 = vpop.xlane.xlu0 %1031
        %v1033 = vrcp.pop %v1032
        %v1034 = vmul.f32 %v1029, %v1033
        %1035 = vrot.lane.b32.xlu0 %v327, 40
        %v1036 = vpop.permute.xlu0 %1035
        %v1039 = vsel %vm339, %v1034, 0
        %1041 = vmatprep.subr.mxu0 0.0
        %1042 = vmatpush1.msra.mxu0 %v1036
        %1043 = vmatprep.subr.mxu0 0.0
        %1044 = vmatpush1.msra.mxu0 0.0
        %1045 = vmatprep.subr.mxu0 0.0
        %1046 = vmatpush1.msra.mxu0 0.0
        %1047 = vmatprep.subr.mxu0 0.0
        %1048 = vmatpush1.msra.mxu0 0.0
        %1049 = vmatprep.subr.mxu0 0.0
        %1050 = vmatpush1.msra.mxu0 0.0
        %1051 = vmatprep.subr.mxu0 0.0
        %1052 = vmatpush1.msra.mxu0 0.0
        %1053 = vmatprep.subr.mxu0 0.0
        %1054 = vmatpush1.msra.mxu0 0.0
        %1055 = vmatprep.subr.mxu0 0.0
        %1056 = vmatpush1.msra.mxu0 0.0
        %1057 = vmatprep.subr.mxu0 0.0
        %1058 = vmatpush1.msra.mxu0 0.0
        %1059 = vmatprep.subr.mxu0 0.0
        %1060 = vmatpush1.msra.mxu0 0.0
        %1061 = vmatprep.subr.mxu0 0.0
        %1062 = vmatpush1.msra.mxu0 0.0
        %1063 = vmatprep.subr.mxu0 0.0
        %1064 = vmatpush1.msra.mxu0 0.0
        %1065 = vmatprep.subr.mxu0 0.0
        %1066 = vmatpush1.msra.mxu0 0.0
        %1067 = vmatprep.subr.mxu0 0.0
        %1068 = vmatpush1.msra.mxu0 0.0
        %1069 = vmatprep.subr.mxu0 0.0
        %1070 = vmatpush1.msra.mxu0 0.0
        %1071 = vmatprep.subr.mxu0 0.0
        %1072 = vmatpush1.msra.mxu0 0.0
        %1073 = vmatprep.subr.mxu0 0.0
        %1074 = vmatpush1.msra.mxu0 0.0
        %1075 = vmatprep.subr.mxu0 0.0
        %1076 = vmatpush1.msra.mxu0 0.0
        %1077 = vmatprep.subr.mxu0 0.0
        %1078 = vmatpush1.msra.mxu0 0.0
        %1079 = vmatprep.subr.mxu0 0.0
        %1080 = vmatpush1.msra.mxu0 0.0
        %1081 = vmatprep.subr.mxu0 0.0
        %1082 = vmatpush1.msra.mxu0 0.0
        %1083 = vmatprep.subr.mxu0 0.0
        %1084 = vmatpush1.msra.mxu0 0.0
        %1085 = vmatprep.subr.mxu0 0.0
        %1086 = vmatpush1.msra.mxu0 0.0
        %1087 = vmatprep.subr.mxu0 0.0
        %1088 = vmatpush1.msra.mxu0 0.0
        %1089 = vmatprep.subr.mxu0 0.0
        %1090 = vmatpush1.msra.mxu0 0.0
        %1091 = vmatprep.subr.mxu0 0.0
        %1092 = vmatpush1.msra.mxu0 0.0
        %1093 = vmatprep.subr.mxu0 0.0
        %1094 = vmatpush1.msra.mxu0 0.0
        %1095 = vmatprep.subr.mxu0 0.0
        %1096 = vmatpush1.msra.mxu0 0.0
        %1097 = vmatprep.subr.mxu0 0.0
        %1098 = vmatpush1.msra.mxu0 0.0
        %1099 = vmatprep.subr.mxu0 0.0
        %1100 = vmatpush1.msra.mxu0 0.0
        %1101 = vmatprep.subr.mxu0 0.0
        %1102 = vmatpush1.msra.mxu0 0.0
        %1103 = vmatprep.subr.mxu0 0.0
        %1104 = vmatpush1.msra.mxu0 0.0
        %1105 = vmatprep.mubr.f32.mxu0 0.0
        %1106 = vmatmul.mubr.f32.gmra.mrb[0].mxu0 %v1039
        %v1107 = vpop.f32.mrb[0].mxu0
        %v1108 = vadd.f32 0.0, %v1107
        %v1109 = vpop.f32.mrb[0].mxu0
        %1110 = vdwg.mxu0
        %1112 = vrot.lane.b32.xlu0 %v726, 8
        %v1113 = vpop.permute.xlu0 %1112
        %1116 = vrot.lane.b32.xlu0 %v917, 16
        %v1117 = vpop.permute.xlu0 %1116
        %1120 = vrot.lane.b32.xlu0 %v1108, 24
        %v1121 = vpop.permute.xlu0 %1120
        %v1123 = vsel %vm339, %v535, %v1113
        %vm1124 = vcmask 130048
        %v1125 = vsel %vm1124, %v1123, %v1117
        %vm1126 = vcmask 195584
        %v1127 = vsel %vm1126, %v1125, %v1121
        %v1128 = vmul.f32 %v1127, %v1127
        %v1129 = vsel %vm288, %v1128, 0.0
        %1130 = vadd.xlane.f32.xlu0 %v1129
        %v1131 = vpop.xlane.xlu0 %1130
        %v1132 = vrcp.pop 32.0
        %v1133 = vmul.f32 %v1131, %v1132
        %v1134 = vadd.f32 %v1133, 1e-06
        %v1135 = vrsqrt.pop %v1134
        %v1136 = vmul.f32 %v1127, %v1135
        %v1137 = vpack.c.bf16 %v1136, %v1136
        %v1138 = vld [vmem:[#allocation7] sm:$0xf]
        %v1139 = vld [vmem:[#allocation7 + $0x4] sm:$0xf]
        %v1140 = vld [vmem:[#allocation7 + $0x8] sm:$0xf]
        %v1141 = vld [vmem:[#allocation7 + $0xc] sm:$0xf]
        %v1146 = vunpack.c.l.b16 %v1138
        %v1147 = vunpack.c.l.b16 %v1139
        %v1148 = vunpack.c.l.b16 %v1140
        %v1149 = vunpack.c.l.b16 %v1141
        %v1150 = vpack.c.b16 %v1147, %v1146
        %v1151 = vpack.c.b16 %v1149, %v1148
        %v1155 = vsel %vm288, %v1137, 0
        %1157 = vmatprep.subr.bf16.mxu0 0
        %1158 = vmatpush1.bf16.msra.mxu0 %v1150
        %1159 = vmatprep.subr.bf16.mxu0 0
        %1160 = vmatpush1.bf16.msra.mxu0 %v1151
        %1161 = vmatprep.subr.bf16.mxu0 0
        %1162 = vmatpush1.bf16.msra.mxu0 0
        %1163 = vmatprep.subr.bf16.mxu0 0
        %1164 = vmatpush1.bf16.msra.mxu0 0
        %1165 = vmatprep.subr.bf16.mxu0 0
        %1166 = vmatpush1.bf16.msra.mxu0 0
        %1167 = vmatprep.subr.bf16.mxu0 0
        %1168 = vmatpush1.bf16.msra.mxu0 0
        %1169 = vmatprep.subr.bf16.mxu0 0
        %1170 = vmatpush1.bf16.msra.mxu0 0
        %1171 = vmatprep.subr.bf16.mxu0 0
        %1172 = vmatpush1.bf16.msra.mxu0 0
        %1173 = vmatprep.subr.bf16.mxu0 0
        %1174 = vmatpush1.bf16.msra.mxu0 0
        %1175 = vmatprep.subr.bf16.mxu0 0
        %1176 = vmatpush1.bf16.msra.mxu0 0
        %1177 = vmatprep.subr.bf16.mxu0 0
        %1178 = vmatpush1.bf16.msra.mxu0 0
        %1179 = vmatprep.subr.bf16.mxu0 0
        %1180 = vmatpush1.bf16.msra.mxu0 0
        %1181 = vmatprep.subr.bf16.mxu0 0
        %1182 = vmatpush1.bf16.msra.mxu0 0
        %1183 = vmatprep.subr.bf16.mxu0 0
        %1184 = vmatpush1.bf16.msra.mxu0 0
        %1185 = vmatprep.subr.bf16.mxu0 0
        %1186 = vmatpush1.bf16.msra.mxu0 0
        %1187 = vmatprep.subr.bf16.mxu0 0
        %1188 = vmatpush1.bf16.msra.mxu0 0
        %1189 = vmatprep.mubr.bf16.mxu0 0
        %1190 = vmatmul.mubr.bf16.gmra.mrb[0].mxu0 %v1155
        %v1191 = vpop.f32.mrb[0].mxu0
        %v1192 = vadd.f32 0.0, %v1191
        %v1193 = vpop.f32.mrb[0].mxu0
        %v1194 = vpop.f32.mrb[0].mxu0
        %v1195 = vpop.f32.mrb[0].mxu0
        %1196 = vdwg.mxu0
        %v1197 = vld [vmem:[%s4] sm:$0x1]
        %v1198 = vsub.f32 %v1192, %v270
        %v1199 = vmul.f32 %v1198, %v1198
        %v1200 = vsel %vm288, %v1199, 0.0
        %1201 = vadd.xlane.f32.xlu0 %v1200
        %v1202 = vpop.xlane.xlu0 %1201
        %v1203 = vmul.f32 %v1202, %v1132
        %v1204 = vadd.f32 %v1203, 1e-06
        %v1205 = vrsqrt.pop %v1204
        %v1206 = vmul.f32 %v1198, %v1205
        %v1208 = vlaneseq
        %v1209 = vshrl.u32 %v1208, 7
        %v1210 = vsub.s32 0, %v1209
        %v1211 = vrot.slane %v1197, %v1210
        %v1213 = vmul.f32 %v1211, %v1206
        %v1214 = vadd.f32 %v270, %v1213
        %v1215 = vmul.f32 %v1214, %v1214
        %v1216 = vsel %vm288, %v1215, 0.0
        %1217 = vadd.xlane.f32.xlu0 %v1216
        %v1218 = vpop.xlane.xlu0 %1217
        %v1219 = vmul.f32 %v1218, %v1132
        %v1220 = vadd.f32 %v1219, 1e-06
        %v1221 = vrsqrt.pop %v1220
        %v1222 = vmul.f32 %v1214, %v1221
        %1223 = vst.msk [vmem:[%s268] sm:$0xff] %vm288, %v1222
        %s1224 = sand.u32 %s141, 1
        %s1225 = scalar_lea.sflag [#allocation4], %s1224
        %s1226 = sand.u32 %s141, 1
        %s1227 = smul.addr %s1226, 8
        %s1228 = scalar_lea.vmem [#allocation8], %s1227
        // Predicated region
        $region53: #{tpu_custom_call.1} parent=39 // pred_check
          %p1229 = pneg %p151
        $region54: #{tpu_custom_call.1} parent=39 // pred_check_branch
          %1231 = sbr.rel (%p1229) target = $region56
        $region55: #{tpu_custom_call.1} parent=39 // pred_region
          %s1233 = ssub.s32 128, 128
          %1234 = vsyncadd %s1225, %s1233
          %s1235 = smul.addr %s23, 128
          %s1236 = scalar_lea.hbm %s5, %s1235
          %s1238 = sshll.u32 %s1228, 4
          %s1239 = int_to_ptr.vmem [resolvable:$true] %s1238
          %1241 = dma.vmem_to_hbm [thread:$0]  %s1239, 128, %s1236, %s1225
        $region56: #{tpu_custom_call.1} parent=39 // pred_fallthru
          _
      $region40: #{tpu_custom_call.1} parent=5 // pred_fallthru
        _
      %p1242 = scmp.le.s32.totalorder 2, %s18
      // Predicated region
      $region57: #{tpu_custom_call.1} parent=5 // pred_check
        %p1243 = pneg %p1242
      $region58: #{tpu_custom_call.1} parent=5 // pred_check_branch
        %1245 = sbr.rel (%p1243) target = $region60
      $region59: #{tpu_custom_call.1} parent=5 // pred_region
        %s1246 = ssub.s32 %s18, 2
        // Predicated region
        $region61: #{tpu_custom_call.1} parent=59 // pred_check
          %p1247 = pneg %p157
        $region62: #{tpu_custom_call.1} parent=59 // pred_check_branch
          %1249 = sbr.rel (%p1247) target = $region64
        $region63: #{tpu_custom_call.1} parent=59 // pred_region
          %s1250 = sand.u32 %s142, 1
          %s1251 = scalar_lea.sflag [#allocation4], %s1250
          %s1252 = sand.u32 %s142, 1
          %s1253 = smul.addr %s1252, 8
          %s1254 = scalar_lea.vmem [#allocation8], %s1253
          %1255 = dma.done %s1251, 128
        $region64: #{tpu_custom_call.1} parent=59 // pred_fallthru
          _
      $region60: #{tpu_custom_call.1} parent=5 // pred_fallthru
        _
    $region6: #{tpu_custom_call.1} parent=1 // loop_footer
      %s22 = sadd.s32 1, %s18
    $region7: #{tpu_custom_call.1} parent=1 // loop_footer_branch
      %17 = sbr.rel target = $region3
    $region8: #{tpu_custom_call.1} parent=1 // loop_exit
      _
    %1256 = vsyncpa [#allocation3], 1
    %s1257 = scalar_lea.sflag [#allocation3], 1
    %1258 = vsyncpa %s1257, 1
    %1259 = vsyncpa [#allocation6], 1
    %1260 = vsyncpa [#allocation4], 1
    %s1261 = scalar_lea.sflag [#allocation4], 1
    %1262 = vsyncpa %s1261, 1

</llo_original>
